<compile_context>
chip_gen: v6e
topology: v6e:2x2x1
jax: 0.10.0
libtpu: 0.0.40
codegen_flags: <defaults>
</compile_context>

<pallas_src>
import jax
import jax.numpy as jnp
from jax import lax
from jax.experimental import pallas as pl
from jax.experimental.pallas import tpu as pltpu

LANE = 128


def edbb_fused_kernel(x_ref, w_ref, b_ref, a_ref, o_ref, xpad_ref):
    """One image per grid step: fused 3x3 conv (im2col, single dot) + PReLU."""
    H, W, Cp = x_ref.shape[1], x_ref.shape[2], x_ref.shape[3]
    HW = H * W

    x = x_ref[0]                                   # (H, W, Cp)

    # Zero only the 1-pixel border of the scratch; the interior is fully
    # overwritten every step, so no full-buffer zero-fill is needed.
    zrow = jnp.zeros((1, W + 2, Cp), jnp.float32)
    zcol = jnp.zeros((H, 1, Cp), jnp.float32)
    xpad_ref[0:1, :, :] = zrow
    xpad_ref[H + 1:H + 2, :, :] = zrow
    xpad_ref[1:H + 1, 0:1, :] = zcol
    xpad_ref[1:H + 1, W + 1:W + 2, :] = zcol
    xpad_ref[1:H + 1, 1:W + 1, :] = x

    # im2col: 9 shifted taps concatenated along the contraction (lane) axis.
    # Tap order (dy-major, then dx) matches the row order of the stacked
    # weight produced by fuse_edbb_params.
    taps = [xpad_ref[dy:dy + H, dx:dx + W, :].reshape(HW, Cp)
            for dy in range(3) for dx in range(3)]
    tap_mat = jnp.concatenate(taps, axis=-1)       # (H*W, 9*Cp)

    # Single MXU matmul with the fused/stacked weight, plus fused bias.
    acc = jnp.dot(tap_mat, w_ref[...], preferred_element_type=jnp.float32)
    acc = acc + b_ref[...]

    # PReLU (per-channel slope), fused on the VPU before the lane-dense store.
    a = a_ref[...]
    acc = jnp.where(acc > 0.0, acc, acc * a)

    o_ref[0] = acc.reshape(H, W, Cp)


def fuse_edbb_params(p, lane=LANE):
    """Exact reparam: all branches -> one 3x3 weight (stacked) + one bias.

    Returns (Wstack[9*Cp, Cp], bias[1, Cp], prelu_a[1, Cp], Cp) with the
    channel dim zero-padded to a multiple of `lane` for lane-dense compute.
    """
    C = p['W11'].shape[0]

    # Per-tap (C_in, C_out) weights, indexed Wf[dy, dx] (HWIO convention).
    Wf = p['Wrep']                                                   # (3,3,C,C)
    Wf = Wf + jnp.einsum('im,yxmo->yxio', p['k013'], p['k113'])      # 1x1 -> 3x3
    dwe = p['dwe'][:, :, :, 0, :]                                    # (3,3,3,C) [e,dy,dx,c]
    Wf = Wf + jnp.einsum('eio,eyxo->yxio', p['k0e'], dwe)            # edge branches
    Wf = Wf.at[1, 1].add(p['W11'] + jnp.eye(C, dtype=jnp.float32))   # 1x1 + identity

    # Fused bias (the b0-border trick folds exactly into b0 @ sum-of-taps).
    bf = (p['brep'] + p['b11'] + p['b113']
          + p['b013'] @ p['k113'].sum(axis=(0, 1))
          + (p['b0e'][:, 0, :] * dwe.sum(axis=(1, 2))).sum(axis=0)[None, :]
          + p['biase'].sum(axis=0))

    # Pad channels to a lane multiple (padded channels stay exactly zero).
    Cp = ((C + lane - 1) // lane) * lane
    pad = Cp - C
    Wf_p = jnp.pad(Wf, ((0, 0), (0, 0), (0, pad), (0, pad)))
    Wstack = Wf_p.reshape(9 * Cp, Cp)              # rows ordered (dy, dx, c_in)
    bf_p = jnp.pad(bf, ((0, 0), (0, pad)))
    a_p = jnp.pad(p['a'], ((0, 0), (0, pad)))
    return Wstack, bf_p, a_p, Cp


def edbb_pallas(x_nhwc, p):
    N, H, W, C = x_nhwc.shape
    Wstack, bf, a, Cp = fuse_edbb_params(p)
    x_p = jnp.pad(x_nhwc, ((0, 0), (0, 0), (0, 0), (0, Cp - C))) if Cp != C else x_nhwc

    in_specs = [
        pl.BlockSpec((1, H, W, Cp), lambda n: (n, 0, 0, 0)),
        pl.BlockSpec((9 * Cp, Cp), lambda n: (0, 0)),   # constant block -> stays resident
        pl.BlockSpec((1, Cp), lambda n: (0, 0)),
        pl.BlockSpec((1, Cp), lambda n: (0, 0)),
    ]
    out_spec = pl.BlockSpec((1, H, W, Cp), lambda n: (n, 0, 0, 0))

    out = pl.pallas_call(
        edbb_fused_kernel,
        out_shape=jax.ShapeDtypeStruct((N, H, W, Cp), jnp.float32),
        grid_spec=pltpu.PrefetchScalarGridSpec(
            num_scalar_prefetch=0,
            grid=(N,),
            in_specs=in_specs,
            out_specs=out_spec,
            scratch_shapes=[pltpu.VMEM((H + 2, W + 2, Cp), jnp.float32)]),
        compiler_params=pltpu.CompilerParams(
            dimension_semantics=("parallel",)),   # no cross-step state -> megacore OK
    )(x_p, Wstack, bf, a)
    return out[..., :C]


def init_params(key, C, depth_multiplier=1):
    """Deterministic synthetic parameters matching EDBB's __init__ shapes."""
    Cm = int(C * depth_multiplier)
    ks = jax.random.split(key, 12)

    def n(k, shape, s=0.1):
        return (jax.random.normal(k, shape) * s).astype(jnp.float32)

    # fixed edge masks, order: sobel-x, sobel-y, laplacian
    masks = jnp.array([
        [[1., 0., -1.], [2., 0., -2.], [1., 0., -1.]],
        [[1., 2., 1.], [0., 0., 0.], [-1., -2., -1.]],
        [[0., 1., 0.], [1., -4., 1.], [0., 1., 0.]],
    ], dtype=jnp.float32)                              # (3, 3, 3)
    scale_e = n(ks[10], (3, C), 0.001)                 # per-branch, per-channel scale
    dwe = (masks[:, :, :, None] * scale_e[:, None, None, :])[:, :, :, None, :]  # (3,3,3,1,C)

    return dict(
        Wrep=n(ks[0], (3, 3, C, C)), brep=n(ks[1], (1, C)),     # rep_conv 3x3
        W11=n(ks[2], (C, C)), b11=n(ks[3], (1, C)),             # conv1x1
        k013=n(ks[4], (C, Cm)), b013=n(ks[5], (1, Cm)),         # seq conv1x1
        k113=n(ks[6], (3, 3, Cm, C)), b113=n(ks[7], (1, C)),    # seq conv3x3
        k0e=n(ks[8], (3, C, C)), b0e=n(ks[9], (3, 1, C)),       # edge conv1x1 (x3)
        dwe=dwe, biase=n(ks[11], (3, 1, C), 0.001),             # edge depthwise + bias
        a=jnp.full((1, C), 0.25, dtype=jnp.float32),            # PReLU slope
    )


def ref_forward(x_nhwc, p):
    """Pure-JAX reference reproducing the PyTorch EDBB.forward (non-deploy)."""
    N, H, W, C = x_nhwc.shape
    dn = ('NHWC', 'HWIO', 'NHWC')
    y = lax.conv_general_dilated(x_nhwc, p['Wrep'], (1, 1), 'SAME',
                                 dimension_numbers=dn) + p['brep']
    y = y + jnp.einsum('nhwc,cd->nhwd', x_nhwc, p['W11']) + p['b11']
    xp = jnp.pad(x_nhwc, ((0, 0), (1, 1), (1, 1), (0, 0)))
    # b0-bordered padding == conv1x1 applied to the zero-padded input
    y0p = jnp.einsum('nhwc,cd->nhwd', xp, p['k013']) + p['b013']
    y = y + lax.conv_general_dilated(y0p, p['k113'], (1, 1), 'VALID',
                                     dimension_numbers=dn) + p['b113']
    for e in range(3):
        y0p = jnp.einsum('nhwc,cd->nhwd', xp, p['k0e'][e]) + p['b0e'][e]
        dw = p['dwe'][e, :, :, 0, :]                    # (3,3,C)
        y = y + lax.conv_general_dilated(y0p, dw[:, :, None, :], (1, 1), 'VALID',
                                         dimension_numbers=dn,
                                         feature_group_count=C) + p['biase'][e]
    y = y + x_nhwc
    return jnp.where(y > 0, y, y * p['a'])


if __name__ == "__main__":
    key = jax.random.PRNGKey(0)
    kx, kp = jax.random.split(key)

    N, C, H, W = 2, 4, 16, 16                 # n_feats = 4, depth_multiplier = 1
    x_nchw = jax.random.normal(kx, (N, C, H, W), dtype=jnp.float32)
    x_nhwc = jnp.transpose(x_nchw, (0, 2, 3, 1))

    params = init_params(kp, C, depth_multiplier=1)

    out = edbb_pallas(x_nhwc, params)
    out = jax.block_until_ready(out)

    ref = ref_forward(x_nhwc, params)
    err = float(jnp.max(jnp.abs(out - ref)))
    assert jnp.allclose(out, ref, rtol=1e-4, atol=1e-4), f"max abs err {err}"

    print("KERNEL_OK")
</pallas_src>

<mosaic_0001>
module attributes {stable_mosaic.version = 11 : i64} {
  func.func @edbb_fused_kernel(%arg0: i32, %arg1: memref<1x16x16x128xf32, #tpu.memory_space<vmem>>, %arg2: memref<1152x128xf32, #tpu.memory_space<vmem>>, %arg3: memref<1x128xf32, #tpu.memory_space<vmem>>, %arg4: memref<1x128xf32, #tpu.memory_space<vmem>>, %arg5: memref<1x16x16x128xf32, #tpu.memory_space<vmem>>, %arg6: memref<18x18x128xf32, #tpu.memory_space<vmem>>) attributes {dimension_semantics = [#tpu.dimension_semantics<parallel>], iteration_bounds = array<i64: 2>, scalar_prefetch = 0 : i64, scratch_operands = 1 : i64, tpu.core_type = #tpu.core_type<tc>, window_params = [{transform_indices = @transform_0, window_bounds = array<i64: 1, 16, 16, 128>}, {pipeline_mode = #tpu.pipeline_mode<synchronous>, transform_indices = @transform_1, window_bounds = array<i64: 1152, 128>}, {pipeline_mode = #tpu.pipeline_mode<synchronous>, transform_indices = @transform_2, window_bounds = array<i64: 1, 128>}, {pipeline_mode = #tpu.pipeline_mode<synchronous>, transform_indices = @transform_3, window_bounds = array<i64: 1, 128>}, {transform_indices = @transform_4, window_bounds = array<i64: 1, 16, 16, 128>}]} {
    %c0 = arith.constant 0 : index
    %c0_0 = arith.constant 0 : index
    %c0_1 = arith.constant 0 : index
    %c0_2 = arith.constant 0 : index
    %0 = vector.load %arg1[%c0, %c0_0, %c0_1, %c0_2] : memref<1x16x16x128xf32, #tpu.memory_space<vmem>>, vector<1x16x16x128xf32>
    %1 = vector.shape_cast %0 : vector<1x16x16x128xf32> to vector<16x16x128xf32>
    %cst = arith.constant 0.000000e+00 : f32
    %2 = vector.broadcast %cst : f32 to vector<1x18x128xf32>
    %cst_3 = arith.constant 0.000000e+00 : f32
    %3 = vector.broadcast %cst_3 : f32 to vector<16x1x128xf32>
    %c0_4 = arith.constant 0 : index
    %c0_5 = arith.constant 0 : index
    %c0_6 = arith.constant 0 : index
    %4 = vector.load %arg6[%c0_4, %c0_5, %c0_6] : memref<18x18x128xf32, #tpu.memory_space<vmem>>, vector<1x18x128xf32>
    tpu.vector_store %arg6[%c0_4, %c0_5, %c0_6], %2 {strides = array<i32>} : memref<18x18x128xf32, #tpu.memory_space<vmem>>, vector<1x18x128xf32>,
    %c17 = arith.constant 17 : index
    %c0_7 = arith.constant 0 : index
    %c0_8 = arith.constant 0 : index
    %5 = vector.load %arg6[%c17, %c0_7, %c0_8] : memref<18x18x128xf32, #tpu.memory_space<vmem>>, vector<1x18x128xf32>
    tpu.vector_store %arg6[%c17, %c0_7, %c0_8], %2 {strides = array<i32>} : memref<18x18x128xf32, #tpu.memory_space<vmem>>, vector<1x18x128xf32>,
    %c1 = arith.constant 1 : index
    %c0_9 = arith.constant 0 : index
    %c0_10 = arith.constant 0 : index
    %6 = vector.load %arg6[%c1, %c0_9, %c0_10] : memref<18x18x128xf32, #tpu.memory_space<vmem>>, vector<16x1x128xf32>
    tpu.vector_store %arg6[%c1, %c0_9, %c0_10], %3 {strides = array<i32>} : memref<18x18x128xf32, #tpu.memory_space<vmem>>, vector<16x1x128xf32>,
    %c1_11 = arith.constant 1 : index
    %c17_12 = arith.constant 17 : index
    %c0_13 = arith.constant 0 : index
    %7 = vector.load %arg6[%c1_11, %c17_12, %c0_13] : memref<18x18x128xf32, #tpu.memory_space<vmem>>, vector<16x1x128xf32>
    tpu.vector_store %arg6[%c1_11, %c17_12, %c0_13], %3 {strides = array<i32>} : memref<18x18x128xf32, #tpu.memory_space<vmem>>, vector<16x1x128xf32>,
    %c1_14 = arith.constant 1 : index
    %c1_15 = arith.constant 1 : index
    %c0_16 = arith.constant 0 : index
    %8 = vector.load %arg6[%c1_14, %c1_15, %c0_16] : memref<18x18x128xf32, #tpu.memory_space<vmem>>, vector<16x16x128xf32>
    tpu.vector_store %arg6[%c1_14, %c1_15, %c0_16], %1 {strides = array<i32>} : memref<18x18x128xf32, #tpu.memory_space<vmem>>, vector<16x16x128xf32>,
    %c0_17 = arith.constant 0 : index
    %c0_18 = arith.constant 0 : index
    %c0_19 = arith.constant 0 : index
    %9 = vector.load %arg6[%c0_17, %c0_18, %c0_19] : memref<18x18x128xf32, #tpu.memory_space<vmem>>, vector<16x16x128xf32>
    %10 = vector.shape_cast %9 : vector<16x16x128xf32> to vector<256x128xf32>
    %c0_20 = arith.constant 0 : index
    %c1_21 = arith.constant 1 : index
    %c0_22 = arith.constant 0 : index
    %11 = vector.load %arg6[%c0_20, %c1_21, %c0_22] : memref<18x18x128xf32, #tpu.memory_space<vmem>>, vector<16x16x128xf32>
    %12 = vector.shape_cast %11 : vector<16x16x128xf32> to vector<256x128xf32>
    %c0_23 = arith.constant 0 : index
    %c2 = arith.constant 2 : index
    %c0_24 = arith.constant 0 : index
    %13 = vector.load %arg6[%c0_23, %c2, %c0_24] : memref<18x18x128xf32, #tpu.memory_space<vmem>>, vector<16x16x128xf32>
    %14 = vector.shape_cast %13 : vector<16x16x128xf32> to vector<256x128xf32>
    %c1_25 = arith.constant 1 : index
    %c0_26 = arith.constant 0 : index
    %c0_27 = arith.constant 0 : index
    %15 = vector.load %arg6[%c1_25, %c0_26, %c0_27] : memref<18x18x128xf32, #tpu.memory_space<vmem>>, vector<16x16x128xf32>
    %16 = vector.shape_cast %15 : vector<16x16x128xf32> to vector<256x128xf32>
    %c1_28 = arith.constant 1 : index
    %c1_29 = arith.constant 1 : index
    %c0_30 = arith.constant 0 : index
    %17 = vector.load %arg6[%c1_28, %c1_29, %c0_30] : memref<18x18x128xf32, #tpu.memory_space<vmem>>, vector<16x16x128xf32>
    %18 = vector.shape_cast %17 : vector<16x16x128xf32> to vector<256x128xf32>
    %c1_31 = arith.constant 1 : index
    %c2_32 = arith.constant 2 : index
    %c0_33 = arith.constant 0 : index
    %19 = vector.load %arg6[%c1_31, %c2_32, %c0_33] : memref<18x18x128xf32, #tpu.memory_space<vmem>>, vector<16x16x128xf32>
    %20 = vector.shape_cast %19 : vector<16x16x128xf32> to vector<256x128xf32>
    %c2_34 = arith.constant 2 : index
    %c0_35 = arith.constant 0 : index
    %c0_36 = arith.constant 0 : index
    %21 = vector.load %arg6[%c2_34, %c0_35, %c0_36] : memref<18x18x128xf32, #tpu.memory_space<vmem>>, vector<16x16x128xf32>
    %22 = vector.shape_cast %21 : vector<16x16x128xf32> to vector<256x128xf32>
    %c2_37 = arith.constant 2 : index
    %c1_38 = arith.constant 1 : index
    %c0_39 = arith.constant 0 : index
    %23 = vector.load %arg6[%c2_37, %c1_38, %c0_39] : memref<18x18x128xf32, #tpu.memory_space<vmem>>, vector<16x16x128xf32>
    %24 = vector.shape_cast %23 : vector<16x16x128xf32> to vector<256x128xf32>
    %c2_40 = arith.constant 2 : index
    %c2_41 = arith.constant 2 : index
    %c0_42 = arith.constant 0 : index
    %25 = vector.load %arg6[%c2_40, %c2_41, %c0_42] : memref<18x18x128xf32, #tpu.memory_space<vmem>>, vector<16x16x128xf32>
    %26 = vector.shape_cast %25 : vector<16x16x128xf32> to vector<256x128xf32>
    %27 = tpu.concatenate %10, %12, %14, %16, %18, %20, %22, %24, %26 in 1 : vector<256x128xf32>, vector<256x128xf32>, vector<256x128xf32>, vector<256x128xf32>, vector<256x128xf32>, vector<256x128xf32>, vector<256x128xf32>, vector<256x128xf32>, vector<256x128xf32> -> vector<256x1152xf32>
    %c0_43 = arith.constant 0 : index
    %c0_44 = arith.constant 0 : index
    %28 = vector.load %arg2[%c0_43, %c0_44] : memref<1152x128xf32, #tpu.memory_space<vmem>>, vector<1152x128xf32>
    %cst_45 = arith.constant dense<0.000000e+00> : vector<256x128xf32>
    %29 = tpu.matmul %27, %28, %cst_45 {dimension_numbers = #tpu.dot_dimension_numbers<[1], [0], [0], [1], [0, 0, 1, 1], [], []>} : vector<256x1152xf32>, vector<1152x128xf32>, vector<256x128xf32> -> vector<256x128xf32>
    %c0_46 = arith.constant 0 : index
    %c0_47 = arith.constant 0 : index
    %30 = vector.load %arg3[%c0_46, %c0_47] : memref<1x128xf32, #tpu.memory_space<vmem>>, vector<1x128xf32>
    %31 = vector.broadcast %30 : vector<1x128xf32> to vector<256x128xf32>
    %32 = arith.addf %29, %31 : vector<256x128xf32>
    %c0_48 = arith.constant 0 : index
    %c0_49 = arith.constant 0 : index
    %33 = vector.load %arg4[%c0_48, %c0_49] : memref<1x128xf32, #tpu.memory_space<vmem>>, vector<1x128xf32>
    %cst_50 = arith.constant 0.000000e+00 : f32
    %34 = vector.broadcast %cst_50 : f32 to vector<256x128xf32>
    %35 = arith.cmpf ogt, %32, %34 : vector<256x128xf32>
    %36 = vector.broadcast %33 : vector<1x128xf32> to vector<256x128xf32>
    %37 = arith.mulf %32, %36 : vector<256x128xf32>
    %38 = arith.select %35, %32, %37 : vector<256x128xi1>, vector<256x128xf32>
    %39 = vector.shape_cast %38 : vector<256x128xf32> to vector<16x16x128xf32>
    %c0_51 = arith.constant 0 : index
    %c0_52 = arith.constant 0 : index
    %c0_53 = arith.constant 0 : index
    %c0_54 = arith.constant 0 : index
    %40 = vector.load %arg5[%c0_51, %c0_52, %c0_53, %c0_54] : memref<1x16x16x128xf32, #tpu.memory_space<vmem>>, vector<1x16x16x128xf32>
    %41 = vector.shape_cast %40 : vector<1x16x16x128xf32> to vector<16x16x128xf32>
    %42 = vector.shape_cast %39 : vector<16x16x128xf32> to vector<1x16x16x128xf32>
    tpu.vector_store %arg5[%c0_51, %c0_52, %c0_53, %c0_54], %42 {strides = array<i32>} : memref<1x16x16x128xf32, #tpu.memory_space<vmem>>, vector<1x16x16x128xf32>,
    return
  }
  func.func @transform_0(%arg0: i32) -> (i32, i32, i32, i32) {
    %c0_i32 = arith.constant 0 : i32
    %c0_i32_0 = arith.constant 0 : i32
    %c0_i32_1 = arith.constant 0 : i32
    %c0_i32_2 = arith.constant 0 : i32
    return %arg0, %c0_i32, %c0_i32_0, %c0_i32_1 : i32, i32, i32, i32
  }
  func.func @transform_1(%arg0: i32) -> (i32, i32) {
    %c0_i32 = arith.constant 0 : i32
    %c0_i32_0 = arith.constant 0 : i32
    %c0_i32_1 = arith.constant 0 : i32
    return %c0_i32, %c0_i32_0 : i32, i32
  }
  func.func @transform_2(%arg0: i32) -> (i32, i32) {
    %c0_i32 = arith.constant 0 : i32
    %c0_i32_0 = arith.constant 0 : i32
    %c0_i32_1 = arith.constant 0 : i32
    return %c0_i32, %c0_i32_0 : i32, i32
  }
  func.func @transform_3(%arg0: i32) -> (i32, i32) {
    %c0_i32 = arith.constant 0 : i32
    %c0_i32_0 = arith.constant 0 : i32
    %c0_i32_1 = arith.constant 0 : i32
    return %c0_i32, %c0_i32_0 : i32, i32
  }
  func.func @transform_4(%arg0: i32) -> (i32, i32, i32, i32) {
    %c0_i32 = arith.constant 0 : i32
    %c0_i32_0 = arith.constant 0 : i32
    %c0_i32_1 = arith.constant 0 : i32
    %c0_i32_2 = arith.constant 0 : i32
    return %arg0, %c0_i32, %c0_i32_0, %c0_i32_1 : i32, i32, i32, i32
  }
}

</mosaic_0001>

<llo_original>
// kernel: tpu_custom_call.1
$region0: #{tpu_custom_call.1}
  #allocation0 [shape = 'u32[]', space=smem, size = 0x4, offset = 0x4, fixed_abs, tag = 'smem constant byte address 0x4 - core index']
  #allocation1 [shape = 'u32[144,128]{1,0:T(1,128)}', space=vmem, size = 0x12000, scoped, tag = 'internal scratch']
  #allocation2 [shape = 'f32[18,18,128]{2,1,0:T(8,128)}', space=vmem, size = 0x36000, scoped, tag = 'scratch operand']
  %s0 = inlined_call_operand.hbm [shape: f32[2,16,16,128], index: 0, kind: input, shape index: {}]
  %s1 = inlined_call_operand.hbm [shape: f32[1152,128], index: 1, kind: input, shape index: {}]
  %s2 = inlined_call_operand.vmem [shape: f32[1,128], index: 2, kind: input, shape index: {}]
  %s3 = inlined_call_operand.vmem [shape: f32[1,128], index: 3, kind: input, shape index: {}]
  %s4 = inlined_call_operand.hbm [shape: f32[2,16,16,128], index: 4, kind: output, shape index: {}]
  %s5 = sld [smem:[#allocation0]]
  $region57: #{tpu_custom_call.1} parent=0
    _
  %s7 = ssub.s32 1, %s5
  %s8 = scalar_select 0, %s7, %s5
  $region1: #{tpu_custom_call.1} parent=0
    #allocation3 [shape = 'u8[262144]{0}', space=vmem, size = 0x40000, scoped, tag = 'input window, operand 0']
    #allocation4 [shape = 's32[2]{0}', space=sflag, size = 0x8, scoped, tag = 'scoped memory for tpu_custom_call.1']
    #allocation5 [shape = 's32[2]{0}', space=sflag, size = 0x8, scoped, tag = 'scoped memory for tpu_custom_call.1']
    #allocation6 [shape = 'u8[589824]{0}', space=vmem, size = 0x90000, scoped, tag = 'input window, operand 1, single buffered']
    #allocation7 [shape = 's32[1]{0}', space=sflag, size = 0x4, scoped, tag = 'scoped memory for tpu_custom_call.1']
    #allocation8 [shape = 'u8[262144]{0}', space=vmem, size = 0x40000, scoped, tag = 'output window, operand 0']
    %9 = vsyncpa [#allocation4], 0
    %s10 = scalar_lea.sflag [#allocation4], 1
    %11 = vsyncpa %s10, 0
    %12 = vsyncpa [#allocation7], 0
    %13 = vsyncpa [#allocation5], 0
    %s14 = scalar_lea.sflag [#allocation5], 1
    %15 = vsyncpa %s14, 0
    loop: start=0, step=1, limit=4
    $region2: #{tpu_custom_call.1} parent=1 // loop_pre_header
      _
    $region3: #{tpu_custom_call.1} parent=1 // loop_header
      %s17 = sphi 0, %s21
      %p18 = scmp.ge.s32.totalorder %s17, 4
      %s27 = sphi 0, %s29
      %s30 = sphi 0, %s27
      %s31 = sphi 0, %s30
      %s47 = sphi 0, %s31
      %s51 = sphi 0, %s51
      %s53 = sphi 0, %s51
      %s54 = sphi 0, %s53
      %s68 = sphi 0, %s54
      %s72 = sphi 0, %s72
      %s74 = sphi 0, %s72
      %s75 = sphi 0, %s74
      %s89 = sphi 0, %s75
      %s93 = sphi 0, %s93
      %s95 = sphi 0, %s93
      %s96 = sphi 0, %s95
      %s110 = sphi 0, %s96
      %s116 = sphi 0, %s118
      %s119 = sphi 0, %s116
      %s120 = sphi 0, %s119
      %s136 = sphi 0, %s120
    $region4: #{tpu_custom_call.1} parent=1 // loop_header_branch
      %20 = sbr.rel (%p18) target = $region8
    $region5: #{tpu_custom_call.1} parent=1 // loop_body
      %s22 = ssub.s32 %s17, 1
      %s23 = ssub.s32 %s17, 2
      %s24 = sadd.s32 %s17, 1
      %s25 = ssub.s32 %s17, %s24
      %p26 = scmp.eq.s32.totalorder %s25, 0
      %s28 = sadd.s32 %s27, 1
      %s29 = scalar_select %p26, %s27, %s28
      %p32 = pneg %p26
      %p33 = scmp.eq.s32.totalorder %s17, 1
      %p34 = por %p32, %p33
      %p35 = scmp.ne.s32.totalorder %s27, %s30
      %p36 = scmp.eq.s32.totalorder %s17, 0
      %p37 = por %p35, %p36
      %p38 = scmp.ne.s32.totalorder %s27, %s30
      %p39 = scmp.eq.s32.totalorder %s22, 1
      %p40 = por %p38, %p39
      %p41 = scmp.ne.s32.totalorder %s30, %s31
      %p42 = scmp.eq.s32.totalorder %s22, 0
      %p43 = por %p41, %p42
      %p44 = scmp.ne.s32.totalorder %s30, %s31
      %p45 = scmp.eq.s32.totalorder %s23, 1
      %p46 = por %p44, %p45
      %p48 = scmp.ne.s32.totalorder %s31, %s47
      %p49 = scmp.eq.s32.totalorder %s23, 0
      %p50 = por %p48, %p49
      %s52 = sadd.s32 %s51, 1
      %p55 = scmp.eq.s32.totalorder %s17, 1
      %p56 = scmp.ne.s32.totalorder %s51, %s53
      %p57 = scmp.eq.s32.totalorder %s17, 0
      %p58 = por %p56, %p57
      %p59 = scmp.ne.s32.totalorder %s51, %s53
      %p60 = scmp.eq.s32.totalorder %s22, 1
      %p61 = por %p59, %p60
      %p62 = scmp.ne.s32.totalorder %s53, %s54
      %p63 = scmp.eq.s32.totalorder %s22, 0
      %p64 = por %p62, %p63
      %p65 = scmp.ne.s32.totalorder %s53, %s54
      %p66 = scmp.eq.s32.totalorder %s23, 1
      %p67 = por %p65, %p66
      %p69 = scmp.ne.s32.totalorder %s54, %s68
      %p70 = scmp.eq.s32.totalorder %s23, 0
      %p71 = por %p69, %p70
      %s73 = sadd.s32 %s72, 1
      %p76 = scmp.eq.s32.totalorder %s17, 1
      %p77 = scmp.ne.s32.totalorder %s72, %s74
      %p78 = scmp.eq.s32.totalorder %s17, 0
      %p79 = por %p77, %p78
      %p80 = scmp.ne.s32.totalorder %s72, %s74
      %p81 = scmp.eq.s32.totalorder %s22, 1
      %p82 = por %p80, %p81
      %p83 = scmp.ne.s32.totalorder %s74, %s75
      %p84 = scmp.eq.s32.totalorder %s22, 0
      %p85 = por %p83, %p84
      %p86 = scmp.ne.s32.totalorder %s74, %s75
      %p87 = scmp.eq.s32.totalorder %s23, 1
      %p88 = por %p86, %p87
      %p90 = scmp.ne.s32.totalorder %s75, %s89
      %p91 = scmp.eq.s32.totalorder %s23, 0
      %p92 = por %p90, %p91
      %s94 = sadd.s32 %s93, 1
      %p97 = scmp.eq.s32.totalorder %s17, 1
      %p98 = scmp.ne.s32.totalorder %s93, %s95
      %p99 = scmp.eq.s32.totalorder %s17, 0
      %p100 = por %p98, %p99
      %p101 = scmp.ne.s32.totalorder %s93, %s95
      %p102 = scmp.eq.s32.totalorder %s22, 1
      %p103 = por %p101, %p102
      %p104 = scmp.ne.s32.totalorder %s95, %s96
      %p105 = scmp.eq.s32.totalorder %s22, 0
      %p106 = por %p104, %p105
      %p107 = scmp.ne.s32.totalorder %s95, %s96
      %p108 = scmp.eq.s32.totalorder %s23, 1
      %p109 = por %p107, %p108
      %p111 = scmp.ne.s32.totalorder %s96, %s110
      %p112 = scmp.eq.s32.totalorder %s23, 0
      %p113 = por %p111, %p112
      %s114 = ssub.s32 %s17, %s24
      %p115 = scmp.eq.s32.totalorder %s114, 0
      %s117 = sadd.s32 %s116, 1
      %s118 = scalar_select %p115, %s116, %s117
      %p121 = pneg %p115
      %p122 = scmp.eq.s32.totalorder %s17, 1
      %p123 = por %p121, %p122
      %p124 = scmp.ne.s32.totalorder %s116, %s119
      %p125 = scmp.eq.s32.totalorder %s17, 0
      %p126 = por %p124, %p125
      %p127 = scmp.ne.s32.totalorder %s116, %s119
      %p128 = scmp.eq.s32.totalorder %s22, 1
      %p129 = por %p127, %p128
      %p130 = scmp.ne.s32.totalorder %s119, %s120
      %p131 = scmp.eq.s32.totalorder %s22, 0
      %p132 = por %p130, %p131
      %p133 = scmp.ne.s32.totalorder %s119, %s120
      %p134 = scmp.eq.s32.totalorder %s23, 1
      %p135 = por %p133, %p134
      %p137 = scmp.ne.s32.totalorder %s120, %s136
      %p138 = scmp.eq.s32.totalorder %s23, 0
      %p139 = por %p137, %p138
      %p140 = scmp.le.s32.totalorder 1, %s17
      %p141 = scmp.lt.s32.totalorder %s17, 3
      %p142 = pnand %p140, %p141
      %p143 = pneg %p142
      // Predicated region
      $region9: #{tpu_custom_call.1} parent=5 // pred_check
        _
      $region10: #{tpu_custom_call.1} parent=5 // pred_check_branch
        %145 = sbr.rel (%p142) target = $region12
      $region11: #{tpu_custom_call.1} parent=5 // pred_region
        %s146 = ssub.s32 %s17, 1
        // Predicated region
        $region13: #{tpu_custom_call.1} parent=11 // pred_check
          %p147 = pneg %p64
        $region14: #{tpu_custom_call.1} parent=11 // pred_check_branch
          %149 = sbr.rel (%p147) target = $region16
        $region15: #{tpu_custom_call.1} parent=11 // pred_region
          %s151 = ssub.s32 18432, 18432
          %152 = vsyncadd [#allocation7], %s151
          %s153 = sshll.u32 [#allocation6], 4
          %s154 = int_to_ptr.vmem [resolvable:$true] %s153
          %159 = dma.hbm_to_vmem [thread:$0]  %s1, 18432, %s154, [#allocation7], 128, 128, 8
        $region16: #{tpu_custom_call.1} parent=11 // pred_fallthru
          _
        // Predicated region
        $region17: #{tpu_custom_call.1} parent=11 // pred_check
          %p160 = pneg %p85
        $region18: #{tpu_custom_call.1} parent=11 // pred_check_branch
          %162 = sbr.rel (%p160) target = $region20
        $region19: #{tpu_custom_call.1} parent=11 // pred_region
          _
        $region20: #{tpu_custom_call.1} parent=11 // pred_fallthru
          _
        // Predicated region
        $region21: #{tpu_custom_call.1} parent=11 // pred_check
          %p163 = pneg %p106
        $region22: #{tpu_custom_call.1} parent=11 // pred_check_branch
          %165 = sbr.rel (%p163) target = $region24
        $region23: #{tpu_custom_call.1} parent=11 // pred_region
          _
        $region24: #{tpu_custom_call.1} parent=11 // pred_fallthru
          _
      $region12: #{tpu_custom_call.1} parent=5 // pred_fallthru
        _
      %p166 = scmp.lt.s32.totalorder %s17, 2
      // Predicated region
      $region25: #{tpu_custom_call.1} parent=5 // pred_check
        %p167 = pneg %p166
      $region26: #{tpu_custom_call.1} parent=5 // pred_check_branch
        %169 = sbr.rel (%p167) target = $region28
      $region27: #{tpu_custom_call.1} parent=5 // pred_region
        // Predicated region
        $region29: #{tpu_custom_call.1} parent=27 // pred_check
          %p170 = pneg %p37
        $region30: #{tpu_custom_call.1} parent=27 // pred_check_branch
          %172 = sbr.rel (%p170) target = $region32
        $region31: #{tpu_custom_call.1} parent=27 // pred_region
          %s173 = sand.u32 %s27, 1
          %s174 = scalar_lea.sflag [#allocation4], %s173
          %s175 = sand.u32 %s27, 1
          %s176 = smul.addr %s175, 256
          %s177 = scalar_lea.vmem [#allocation3], %s176
          %s179 = ssub.s32 4096, 4096
          %180 = vsyncadd %s174, %s179
          %s181 = smul.addr %s17, 32
          %s182 = smul.addr %s181, 128
          %s183 = scalar_lea.hbm %s0, %s182
          %s184 = sshll.u32 %s177, 4
          %s185 = int_to_ptr.vmem [resolvable:$true] %s184
          %190 = dma.hbm_to_vmem [thread:$0]  %s183, 4096, %s185, %s174, 128, 128, 8
        $region32: #{tpu_custom_call.1} parent=27 // pred_fallthru
          _
      $region28: #{tpu_custom_call.1} parent=5 // pred_fallthru
        _
      %p191 = scmp.le.s32.totalorder 1, %s17
      %p192 = scmp.lt.s32.totalorder %s17, 3
      %p193 = pnand %p191, %p192
      %p194 = pneg %p193
      // Predicated region
      $region33: #{tpu_custom_call.1} parent=5 // pred_check
        _
      $region34: #{tpu_custom_call.1} parent=5 // pred_check_branch
        %196 = sbr.rel (%p193) target = $region36
      $region35: #{tpu_custom_call.1} parent=5 // pred_region
        %s197 = ssub.s32 %s17, 1
        %s198 = sand.u32 %s30, 1
        %s199 = scalar_lea.sflag [#allocation4], %s198
        %s200 = sand.u32 %s30, 1
        %s201 = smul.addr %s200, 256
        %s202 = scalar_lea.vmem [#allocation3], %s201
        // Predicated region
        $region37: #{tpu_custom_call.1} parent=35 // pred_check
          %p203 = pneg %p43
        $region38: #{tpu_custom_call.1} parent=35 // pred_check_branch
          %205 = sbr.rel (%p203) target = $region40
        $region39: #{tpu_custom_call.1} parent=35 // pred_region
          %206 = dma.done %s199, 4096
        $region40: #{tpu_custom_call.1} parent=35 // pred_fallthru
          _
        // Predicated region
        $region41: #{tpu_custom_call.1} parent=35 // pred_check
          %p207 = pneg %p64
        $region42: #{tpu_custom_call.1} parent=35 // pred_check_branch
          %209 = sbr.rel (%p207) target = $region44
        $region43: #{tpu_custom_call.1} parent=35 // pred_region
          %210 = dma.done [#allocation7], 18432
        $region44: #{tpu_custom_call.1} parent=35 // pred_fallthru
          _
        %s211 = sand.u32 %s30, 1
        %s212 = scalar_lea.sflag [#allocation4], %s211
        %s213 = sand.u32 %s30, 1
        %s214 = smul.addr %s213, 256
        %s215 = scalar_lea.vmem [#allocation3], %s214
        %p216 = pneg %p43
        %p217 = pneg %p40
        %p218 = pneg %p64
        %p219 = pneg %p61
        %p220 = pneg %p85
        %p221 = pneg %p82
        %p222 = pneg %p106
        %p223 = pneg %p103
        %p224 = pneg %p132
        %p225 = pneg %p129
        %s226 = sand.u32 %s119, 1
        %s227 = scalar_lea.sflag [#allocation5], %s226
        %s228 = sand.u32 %s119, 1
        %s229 = smul.addr %s228, 256
        %s230 = scalar_lea.vmem [#allocation8], %s229
        %v231 = vld [vmem:[%s202] sm:$0xff]
        %v232 = vld [vmem:[%s202 + $0x8] sm:$0xff]
        %v233 = vld [vmem:[%s202 + $0x10] sm:$0xff]
        %v234 = vld [vmem:[%s202 + $0x18] sm:$0xff]
        %v235 = vld [vmem:[%s202 + $0x20] sm:$0xff]
        %v236 = vld [vmem:[%s202 + $0x28] sm:$0xff]
        %v237 = vld [vmem:[%s202 + $0x30] sm:$0xff]
        %v238 = vld [vmem:[%s202 + $0x38] sm:$0xff]
        %v239 = vld [vmem:[%s202 + $0x40] sm:$0xff]
        %v240 = vld [vmem:[%s202 + $0x48] sm:$0xff]
        %v241 = vld [vmem:[%s202 + $0x50] sm:$0xff]
        %v242 = vld [vmem:[%s202 + $0x58] sm:$0xff]
        %v243 = vld [vmem:[%s202 + $0x60] sm:$0xff]
        %v244 = vld [vmem:[%s202 + $0x68] sm:$0xff]
        %v245 = vld [vmem:[%s202 + $0x70] sm:$0xff]
        %v246 = vld [vmem:[%s202 + $0x78] sm:$0xff]
        %v247 = vld [vmem:[%s202 + $0x80] sm:$0xff]
        %v248 = vld [vmem:[%s202 + $0x88] sm:$0xff]
        %v249 = vld [vmem:[%s202 + $0x90] sm:$0xff]
        %v250 = vld [vmem:[%s202 + $0x98] sm:$0xff]
        %v251 = vld [vmem:[%s202 + $0xa0] sm:$0xff]
        %v252 = vld [vmem:[%s202 + $0xa8] sm:$0xff]
        %v253 = vld [vmem:[%s202 + $0xb0] sm:$0xff]
        %v254 = vld [vmem:[%s202 + $0xb8] sm:$0xff]
        %v255 = vld [vmem:[%s202 + $0xc0] sm:$0xff]
        %v256 = vld [vmem:[%s202 + $0xc8] sm:$0xff]
        %v257 = vld [vmem:[%s202 + $0xd0] sm:$0xff]
        %v258 = vld [vmem:[%s202 + $0xd8] sm:$0xff]
        %v259 = vld [vmem:[%s202 + $0xe0] sm:$0xff]
        %v260 = vld [vmem:[%s202 + $0xe8] sm:$0xff]
        %v261 = vld [vmem:[%s202 + $0xf0] sm:$0xff]
        %v262 = vld [vmem:[%s202 + $0xf8] sm:$0xff]
        %263 = vst [vmem:[#allocation2] sm:$0xff] 0.0
        %264 = vst [vmem:[#allocation2 + $0x8] sm:$0xff] 0.0
        %265 = vst [vmem:[#allocation2 + $0x10] sm:$0x3] 0.0
        %s266 = scalar_lea.vmem [#allocation2], 408
        %267 = vst [vmem:[%s266] sm:$0xff] 0.0
        %268 = vst [vmem:[%s266 + $0x8] sm:$0xff] 0.0
        %269 = vst [vmem:[%s266 + $0x10] sm:$0x3] 0.0
        %s270 = scalar_lea.vmem [#allocation2], 24
        %271 = vst [vmem:[%s270] sm:$0x1] 0.0
        %272 = vst [vmem:[%s270 + $0x18] sm:$0x1] 0.0
        %273 = vst [vmem:[%s270 + $0x30] sm:$0x1] 0.0
        %274 = vst [vmem:[%s270 + $0x48] sm:$0x1] 0.0
        %275 = vst [vmem:[%s270 + $0x60] sm:$0x1] 0.0
        %276 = vst [vmem:[%s270 + $0x78] sm:$0x1] 0.0
        %277 = vst [vmem:[%s270 + $0x90] sm:$0x1] 0.0
        %278 = vst [vmem:[%s270 + $0xa8] sm:$0x1] 0.0
        %279 = vst [vmem:[%s270 + $0xc0] sm:$0x1] 0.0
        %280 = vst [vmem:[%s270 + $0xd8] sm:$0x1] 0.0
        %281 = vst [vmem:[%s270 + $0xf0] sm:$0x1] 0.0
        %282 = vst [vmem:[%s270 + $0x108] sm:$0x1] 0.0
        %283 = vst [vmem:[%s270 + $0x120] sm:$0x1] 0.0
        %284 = vst [vmem:[%s270 + $0x138] sm:$0x1] 0.0
        %285 = vst [vmem:[%s270 + $0x150] sm:$0x1] 0.0
        %286 = vst [vmem:[%s270 + $0x168] sm:$0x1] 0.0
        %287 = vst [vmem:[%s270 + $0x11] sm:$0x1] 0.0
        %288 = vst [vmem:[%s270 + $0x29] sm:$0x1] 0.0
        %289 = vst [vmem:[%s270 + $0x41] sm:$0x1] 0.0
        %290 = vst [vmem:[%s270 + $0x59] sm:$0x1] 0.0
        %291 = vst [vmem:[%s270 + $0x71] sm:$0x1] 0.0
        %292 = vst [vmem:[%s270 + $0x89] sm:$0x1] 0.0
        %293 = vst [vmem:[%s270 + $0xa1] sm:$0x1] 0.0
        %294 = vst [vmem:[%s270 + $0xb9] sm:$0x1] 0.0
        %295 = vst [vmem:[%s270 + $0xd1] sm:$0x1] 0.0
        %296 = vst [vmem:[%s270 + $0xe9] sm:$0x1] 0.0
        %297 = vst [vmem:[%s270 + $0x101] sm:$0x1] 0.0
        %298 = vst [vmem:[%s270 + $0x119] sm:$0x1] 0.0
        %299 = vst [vmem:[%s270 + $0x131] sm:$0x1] 0.0
        %300 = vst [vmem:[%s270 + $0x149] sm:$0x1] 0.0
        %301 = vst [vmem:[%s270 + $0x161] sm:$0x1] 0.0
        %302 = vst [vmem:[%s270 + $0x179] sm:$0x1] 0.0
        %303 = vst [vmem:[%s270 + $0x1] sm:$0xff] %v231
        %304 = vst [vmem:[%s270 + $0x9] sm:$0xff] %v232
        %305 = vst [vmem:[%s270 + $0x19] sm:$0xff] %v233
        %306 = vst [vmem:[%s270 + $0x21] sm:$0xff] %v234
        %307 = vst [vmem:[%s270 + $0x31] sm:$0xff] %v235
        %308 = vst [vmem:[%s270 + $0x39] sm:$0xff] %v236
        %309 = vst [vmem:[%s270 + $0x49] sm:$0xff] %v237
        %310 = vst [vmem:[%s270 + $0x51] sm:$0xff] %v238
        %311 = vst [vmem:[%s270 + $0x61] sm:$0xff] %v239
        %312 = vst [vmem:[%s270 + $0x69] sm:$0xff] %v240
        %313 = vst [vmem:[%s270 + $0x79] sm:$0xff] %v241
        %314 = vst [vmem:[%s270 + $0x81] sm:$0xff] %v242
        %315 = vst [vmem:[%s270 + $0x91] sm:$0xff] %v243
        %316 = vst [vmem:[%s270 + $0x99] sm:$0xff] %v244
        %317 = vst [vmem:[%s270 + $0xa9] sm:$0xff] %v245
        %318 = vst [vmem:[%s270 + $0xb1] sm:$0xff] %v246
        %319 = vst [vmem:[%s270 + $0xc1] sm:$0xff] %v247
        %320 = vst [vmem:[%s270 + $0xc9] sm:$0xff] %v248
        %321 = vst [vmem:[%s270 + $0xd9] sm:$0xff] %v249
        %322 = vst [vmem:[%s270 + $0xe1] sm:$0xff] %v250
        %323 = vst [vmem:[%s270 + $0xf1] sm:$0xff] %v251
        %324 = vst [vmem:[%s270 + $0xf9] sm:$0xff] %v252
        %325 = vst [vmem:[%s270 + $0x109] sm:$0xff] %v253
        %326 = vst [vmem:[%s270 + $0x111] sm:$0xff] %v254
        %327 = vst [vmem:[%s270 + $0x121] sm:$0xff] %v255
        %328 = vst [vmem:[%s270 + $0x129] sm:$0xff] %v256
        %329 = vst [vmem:[%s270 + $0x139] sm:$0xff] %v257
        %330 = vst [vmem:[%s270 + $0x141] sm:$0xff] %v258
        %331 = vst [vmem:[%s270 + $0x151] sm:$0xff] %v259
        %332 = vst [vmem:[%s270 + $0x159] sm:$0xff] %v260
        %333 = vst [vmem:[%s270 + $0x169] sm:$0xff] %v261
        %334 = vst [vmem:[%s270 + $0x171] sm:$0xff] %v262
        %v335 = vld [vmem:[#allocation2] sm:$0xff]
        %v336 = vld [vmem:[#allocation2 + $0x8] sm:$0xff]
        %v337 = vld [vmem:[#allocation2 + $0x18] sm:$0xff]
        %v338 = vld [vmem:[#allocation2 + $0x20] sm:$0xff]
        %v339 = vld [vmem:[#allocation2 + $0x30] sm:$0xff]
        %v340 = vld [vmem:[#allocation2 + $0x38] sm:$0xff]
        %v341 = vld [vmem:[#allocation2 + $0x48] sm:$0xff]
        %v342 = vld [vmem:[#allocation2 + $0x50] sm:$0xff]
        %v343 = vld [vmem:[#allocation2 + $0x60] sm:$0xff]
        %v344 = vld [vmem:[#allocation2 + $0x68] sm:$0xff]
        %v345 = vld [vmem:[#allocation2 + $0x78] sm:$0xff]
        %v346 = vld [vmem:[#allocation2 + $0x80] sm:$0xff]
        %v347 = vld [vmem:[#allocation2 + $0x90] sm:$0xff]
        %v348 = vld [vmem:[#allocation2 + $0x98] sm:$0xff]
        %v349 = vld [vmem:[#allocation2 + $0xa8] sm:$0xff]
        %v350 = vld [vmem:[#allocation2 + $0xb0] sm:$0xff]
        %v351 = vld [vmem:[#allocation2 + $0xc0] sm:$0xff]
        %v352 = vld [vmem:[#allocation2 + $0xc8] sm:$0xff]
        %v353 = vld [vmem:[#allocation2 + $0xd8] sm:$0xff]
        %v354 = vld [vmem:[#allocation2 + $0xe0] sm:$0xff]
        %v355 = vld [vmem:[#allocation2 + $0xf0] sm:$0xff]
        %v356 = vld [vmem:[#allocation2 + $0xf8] sm:$0xff]
        %v357 = vld [vmem:[#allocation2 + $0x108] sm:$0xff]
        %v358 = vld [vmem:[#allocation2 + $0x110] sm:$0xff]
        %v359 = vld [vmem:[#allocation2 + $0x120] sm:$0xff]
        %v360 = vld [vmem:[#allocation2 + $0x128] sm:$0xff]
        %v361 = vld [vmem:[#allocation2 + $0x138] sm:$0xff]
        %v362 = vld [vmem:[#allocation2 + $0x140] sm:$0xff]
        %v363 = vld [vmem:[#allocation2 + $0x150] sm:$0xff]
        %v364 = vld [vmem:[#allocation2 + $0x158] sm:$0xff]
        %v365 = vld [vmem:[#allocation2 + $0x168] sm:$0xff]
        %v366 = vld [vmem:[#allocation2 + $0x170] sm:$0xff]
        %v367 = vld [vmem:[#allocation2 + $0x1] sm:$0xff]
        %v368 = vld [vmem:[#allocation2 + $0x9] sm:$0xff]
        %v369 = vld [vmem:[#allocation2 + $0x19] sm:$0xff]
        %v370 = vld [vmem:[#allocation2 + $0x21] sm:$0xff]
        %v371 = vld [vmem:[#allocation2 + $0x31] sm:$0xff]
        %v372 = vld [vmem:[#allocation2 + $0x39] sm:$0xff]
        %v373 = vld [vmem:[#allocation2 + $0x49] sm:$0xff]
        %v374 = vld [vmem:[#allocation2 + $0x51] sm:$0xff]
        %v375 = vld [vmem:[#allocation2 + $0x61] sm:$0xff]
        %v376 = vld [vmem:[#allocation2 + $0x69] sm:$0xff]
        %v377 = vld [vmem:[#allocation2 + $0x79] sm:$0xff]
        %v378 = vld [vmem:[#allocation2 + $0x81] sm:$0xff]
        %v379 = vld [vmem:[#allocation2 + $0x91] sm:$0xff]
        %v380 = vld [vmem:[#allocation2 + $0x99] sm:$0xff]
        %v381 = vld [vmem:[#allocation2 + $0xa9] sm:$0xff]
        %v382 = vld [vmem:[#allocation2 + $0xb1] sm:$0xff]
        %v383 = vld [vmem:[#allocation2 + $0xc1] sm:$0xff]
        %v384 = vld [vmem:[#allocation2 + $0xc9] sm:$0xff]
        %v385 = vld [vmem:[#allocation2 + $0xd9] sm:$0xff]
        %v386 = vld [vmem:[#allocation2 + $0xe1] sm:$0xff]
        %v387 = vld [vmem:[#allocation2 + $0xf1] sm:$0xff]
        %v388 = vld [vmem:[#allocation2 + $0xf9] sm:$0xff]
        %v389 = vld [vmem:[#allocation2 + $0x109] sm:$0xff]
        %v390 = vld [vmem:[#allocation2 + $0x111] sm:$0xff]
        %v391 = vld [vmem:[#allocation2 + $0x121] sm:$0xff]
        %v392 = vld [vmem:[#allocation2 + $0x129] sm:$0xff]
        %v393 = vld [vmem:[#allocation2 + $0x139] sm:$0xff]
        %v394 = vld [vmem:[#allocation2 + $0x141] sm:$0xff]
        %v395 = vld [vmem:[#allocation2 + $0x151] sm:$0xff]
        %v396 = vld [vmem:[#allocation2 + $0x159] sm:$0xff]
        %v397 = vld [vmem:[#allocation2 + $0x169] sm:$0xff]
        %v398 = vld [vmem:[#allocation2 + $0x171] sm:$0xff]
        %v399 = vld [vmem:[#allocation2 + $0x2] sm:$0xff]
        %v400 = vld [vmem:[#allocation2 + $0xa] sm:$0xff]
        %v401 = vld [vmem:[#allocation2 + $0x1a] sm:$0xff]
        %v402 = vld [vmem:[#allocation2 + $0x22] sm:$0xff]
        %v403 = vld [vmem:[#allocation2 + $0x32] sm:$0xff]
        %v404 = vld [vmem:[#allocation2 + $0x3a] sm:$0xff]
        %v405 = vld [vmem:[#allocation2 + $0x4a] sm:$0xff]
        %v406 = vld [vmem:[#allocation2 + $0x52] sm:$0xff]
        %v407 = vld [vmem:[#allocation2 + $0x62] sm:$0xff]
        %v408 = vld [vmem:[#allocation2 + $0x6a] sm:$0xff]
        %v409 = vld [vmem:[#allocation2 + $0x7a] sm:$0xff]
        %v410 = vld [vmem:[#allocation2 + $0x82] sm:$0xff]
        %v411 = vld [vmem:[#allocation2 + $0x92] sm:$0xff]
        %v412 = vld [vmem:[#allocation2 + $0x9a] sm:$0xff]
        %v413 = vld [vmem:[#allocation2 + $0xaa] sm:$0xff]
        %v414 = vld [vmem:[#allocation2 + $0xb2] sm:$0xff]
        %v415 = vld [vmem:[#allocation2 + $0xc2] sm:$0xff]
        %v416 = vld [vmem:[#allocation2 + $0xca] sm:$0xff]
        %v417 = vld [vmem:[#allocation2 + $0xda] sm:$0xff]
        %v418 = vld [vmem:[#allocation2 + $0xe2] sm:$0xff]
        %v419 = vld [vmem:[#allocation2 + $0xf2] sm:$0xff]
        %v420 = vld [vmem:[#allocation2 + $0xfa] sm:$0xff]
        %v421 = vld [vmem:[#allocation2 + $0x10a] sm:$0xff]
        %v422 = vld [vmem:[#allocation2 + $0x112] sm:$0xff]
        %v423 = vld [vmem:[#allocation2 + $0x122] sm:$0xff]
        %v424 = vld [vmem:[#allocation2 + $0x12a] sm:$0xff]
        %v425 = vld [vmem:[#allocation2 + $0x13a] sm:$0xff]
        %v426 = vld [vmem:[#allocation2 + $0x142] sm:$0xff]
        %v427 = vld [vmem:[#allocation2 + $0x152] sm:$0xff]
        %v428 = vld [vmem:[#allocation2 + $0x15a] sm:$0xff]
        %v429 = vld [vmem:[#allocation2 + $0x16a] sm:$0xff]
        %v430 = vld [vmem:[#allocation2 + $0x172] sm:$0xff]
        %v431 = vld [vmem:[%s270] sm:$0xff]
        %v432 = vld [vmem:[%s270 + $0x8] sm:$0xff]
        %v433 = vld [vmem:[%s270 + $0x18] sm:$0xff]
        %v434 = vld [vmem:[%s270 + $0x20] sm:$0xff]
        %v435 = vld [vmem:[%s270 + $0x30] sm:$0xff]
        %v436 = vld [vmem:[%s270 + $0x38] sm:$0xff]
        %v437 = vld [vmem:[%s270 + $0x48] sm:$0xff]
        %v438 = vld [vmem:[%s270 + $0x50] sm:$0xff]
        %v439 = vld [vmem:[%s270 + $0x60] sm:$0xff]
        %v440 = vld [vmem:[%s270 + $0x68] sm:$0xff]
        %v441 = vld [vmem:[%s270 + $0x78] sm:$0xff]
        %v442 = vld [vmem:[%s270 + $0x80] sm:$0xff]
        %v443 = vld [vmem:[%s270 + $0x90] sm:$0xff]
        %v444 = vld [vmem:[%s270 + $0x98] sm:$0xff]
        %v445 = vld [vmem:[%s270 + $0xa8] sm:$0xff]
        %v446 = vld [vmem:[%s270 + $0xb0] sm:$0xff]
        %v447 = vld [vmem:[%s270 + $0xc0] sm:$0xff]
        %v448 = vld [vmem:[%s270 + $0xc8] sm:$0xff]
        %v449 = vld [vmem:[%s270 + $0xd8] sm:$0xff]
        %v450 = vld [vmem:[%s270 + $0xe0] sm:$0xff]
        %v451 = vld [vmem:[%s270 + $0xf0] sm:$0xff]
        %v452 = vld [vmem:[%s270 + $0xf8] sm:$0xff]
        %v453 = vld [vmem:[%s270 + $0x108] sm:$0xff]
        %v454 = vld [vmem:[%s270 + $0x110] sm:$0xff]
        %v455 = vld [vmem:[%s270 + $0x120] sm:$0xff]
        %v456 = vld [vmem:[%s270 + $0x128] sm:$0xff]
        %v457 = vld [vmem:[%s270 + $0x138] sm:$0xff]
        %v458 = vld [vmem:[%s270 + $0x140] sm:$0xff]
        %v459 = vld [vmem:[%s270 + $0x150] sm:$0xff]
        %v460 = vld [vmem:[%s270 + $0x158] sm:$0xff]
        %v461 = vld [vmem:[%s270 + $0x168] sm:$0xff]
        %v462 = vld [vmem:[%s270 + $0x170] sm:$0xff]
        %v463 = vld [vmem:[%s270 + $0x1] sm:$0xff]
        %v464 = vld [vmem:[%s270 + $0x9] sm:$0xff]
        %v465 = vld [vmem:[%s270 + $0x19] sm:$0xff]
        %v466 = vld [vmem:[%s270 + $0x21] sm:$0xff]
        %v467 = vld [vmem:[%s270 + $0x31] sm:$0xff]
        %v468 = vld [vmem:[%s270 + $0x39] sm:$0xff]
        %v469 = vld [vmem:[%s270 + $0x49] sm:$0xff]
        %v470 = vld [vmem:[%s270 + $0x51] sm:$0xff]
        %v471 = vld [vmem:[%s270 + $0x61] sm:$0xff]
        %v472 = vld [vmem:[%s270 + $0x69] sm:$0xff]
        %v473 = vld [vmem:[%s270 + $0x79] sm:$0xff]
        %v474 = vld [vmem:[%s270 + $0x81] sm:$0xff]
        %v475 = vld [vmem:[%s270 + $0x91] sm:$0xff]
        %v476 = vld [vmem:[%s270 + $0x99] sm:$0xff]
        %v477 = vld [vmem:[%s270 + $0xa9] sm:$0xff]
        %v478 = vld [vmem:[%s270 + $0xb1] sm:$0xff]
        %v479 = vld [vmem:[%s270 + $0xc1] sm:$0xff]
        %v480 = vld [vmem:[%s270 + $0xc9] sm:$0xff]
        %v481 = vld [vmem:[%s270 + $0xd9] sm:$0xff]
        %v482 = vld [vmem:[%s270 + $0xe1] sm:$0xff]
        %v483 = vld [vmem:[%s270 + $0xf1] sm:$0xff]
        %v484 = vld [vmem:[%s270 + $0xf9] sm:$0xff]
        %v485 = vld [vmem:[%s270 + $0x109] sm:$0xff]
        %v486 = vld [vmem:[%s270 + $0x111] sm:$0xff]
        %v487 = vld [vmem:[%s270 + $0x121] sm:$0xff]
        %v488 = vld [vmem:[%s270 + $0x129] sm:$0xff]
        %v489 = vld [vmem:[%s270 + $0x139] sm:$0xff]
        %v490 = vld [vmem:[%s270 + $0x141] sm:$0xff]
        %v491 = vld [vmem:[%s270 + $0x151] sm:$0xff]
        %v492 = vld [vmem:[%s270 + $0x159] sm:$0xff]
        %v493 = vld [vmem:[%s270 + $0x169] sm:$0xff]
        %v494 = vld [vmem:[%s270 + $0x171] sm:$0xff]
        %v495 = vld [vmem:[%s270 + $0x2] sm:$0xff]
        %v496 = vld [vmem:[%s270 + $0xa] sm:$0xff]
        %v497 = vld [vmem:[%s270 + $0x1a] sm:$0xff]
        %v498 = vld [vmem:[%s270 + $0x22] sm:$0xff]
        %v499 = vld [vmem:[%s270 + $0x32] sm:$0xff]
        %v500 = vld [vmem:[%s270 + $0x3a] sm:$0xff]
        %v501 = vld [vmem:[%s270 + $0x4a] sm:$0xff]
        %v502 = vld [vmem:[%s270 + $0x52] sm:$0xff]
        %v503 = vld [vmem:[%s270 + $0x62] sm:$0xff]
        %v504 = vld [vmem:[%s270 + $0x6a] sm:$0xff]
        %v505 = vld [vmem:[%s270 + $0x7a] sm:$0xff]
        %v506 = vld [vmem:[%s270 + $0x82] sm:$0xff]
        %v507 = vld [vmem:[%s270 + $0x92] sm:$0xff]
        %v508 = vld [vmem:[%s270 + $0x9a] sm:$0xff]
        %v509 = vld [vmem:[%s270 + $0xaa] sm:$0xff]
        %v510 = vld [vmem:[%s270 + $0xb2] sm:$0xff]
        %v511 = vld [vmem:[%s270 + $0xc2] sm:$0xff]
        %v512 = vld [vmem:[%s270 + $0xca] sm:$0xff]
        %v513 = vld [vmem:[%s270 + $0xda] sm:$0xff]
        %v514 = vld [vmem:[%s270 + $0xe2] sm:$0xff]
        %v515 = vld [vmem:[%s270 + $0xf2] sm:$0xff]
        %v516 = vld [vmem:[%s270 + $0xfa] sm:$0xff]
        %v517 = vld [vmem:[%s270 + $0x10a] sm:$0xff]
        %v518 = vld [vmem:[%s270 + $0x112] sm:$0xff]
        %v519 = vld [vmem:[%s270 + $0x122] sm:$0xff]
        %v520 = vld [vmem:[%s270 + $0x12a] sm:$0xff]
        %v521 = vld [vmem:[%s270 + $0x13a] sm:$0xff]
        %v522 = vld [vmem:[%s270 + $0x142] sm:$0xff]
        %v523 = vld [vmem:[%s270 + $0x152] sm:$0xff]
        %v524 = vld [vmem:[%s270 + $0x15a] sm:$0xff]
        %v525 = vld [vmem:[%s270 + $0x16a] sm:$0xff]
        %v526 = vld [vmem:[%s270 + $0x172] sm:$0xff]
        %s527 = scalar_lea.vmem [#allocation2], 48
        %v528 = vld [vmem:[%s527] sm:$0xff]
        %v529 = vld [vmem:[%s527 + $0x8] sm:$0xff]
        %v530 = vld [vmem:[%s527 + $0x18] sm:$0xff]
        %v531 = vld [vmem:[%s527 + $0x20] sm:$0xff]
        %v532 = vld [vmem:[%s527 + $0x30] sm:$0xff]
        %v533 = vld [vmem:[%s527 + $0x38] sm:$0xff]
        %v534 = vld [vmem:[%s527 + $0x48] sm:$0xff]
        %v535 = vld [vmem:[%s527 + $0x50] sm:$0xff]
        %v536 = vld [vmem:[%s527 + $0x60] sm:$0xff]
        %v537 = vld [vmem:[%s527 + $0x68] sm:$0xff]
        %v538 = vld [vmem:[%s527 + $0x78] sm:$0xff]
        %v539 = vld [vmem:[%s527 + $0x80] sm:$0xff]
        %v540 = vld [vmem:[%s527 + $0x90] sm:$0xff]
        %v541 = vld [vmem:[%s527 + $0x98] sm:$0xff]
        %v542 = vld [vmem:[%s527 + $0xa8] sm:$0xff]
        %v543 = vld [vmem:[%s527 + $0xb0] sm:$0xff]
        %v544 = vld [vmem:[%s527 + $0xc0] sm:$0xff]
        %v545 = vld [vmem:[%s527 + $0xc8] sm:$0xff]
        %v546 = vld [vmem:[%s527 + $0xd8] sm:$0xff]
        %v547 = vld [vmem:[%s527 + $0xe0] sm:$0xff]
        %v548 = vld [vmem:[%s527 + $0xf0] sm:$0xff]
        %v549 = vld [vmem:[%s527 + $0xf8] sm:$0xff]
        %v550 = vld [vmem:[%s527 + $0x108] sm:$0xff]
        %v551 = vld [vmem:[%s527 + $0x110] sm:$0xff]
        %v552 = vld [vmem:[%s527 + $0x120] sm:$0xff]
        %v553 = vld [vmem:[%s527 + $0x128] sm:$0xff]
        %v554 = vld [vmem:[%s527 + $0x138] sm:$0xff]
        %v555 = vld [vmem:[%s527 + $0x140] sm:$0xff]
        %v556 = vld [vmem:[%s527 + $0x150] sm:$0xff]
        %v557 = vld [vmem:[%s527 + $0x158] sm:$0xff]
        %v558 = vld [vmem:[%s527 + $0x168] sm:$0xff]
        %v559 = vld [vmem:[%s527 + $0x170] sm:$0xff]
        %v560 = vld [vmem:[%s527 + $0x1] sm:$0xff]
        %v561 = vld [vmem:[%s527 + $0x9] sm:$0xff]
        %v562 = vld [vmem:[%s527 + $0x19] sm:$0xff]
        %v563 = vld [vmem:[%s527 + $0x21] sm:$0xff]
        %v564 = vld [vmem:[%s527 + $0x31] sm:$0xff]
        %v565 = vld [vmem:[%s527 + $0x39] sm:$0xff]
        %v566 = vld [vmem:[%s527 + $0x49] sm:$0xff]
        %v567 = vld [vmem:[%s527 + $0x51] sm:$0xff]
        %v568 = vld [vmem:[%s527 + $0x61] sm:$0xff]
        %v569 = vld [vmem:[%s527 + $0x69] sm:$0xff]
        %v570 = vld [vmem:[%s527 + $0x79] sm:$0xff]
        %v571 = vld [vmem:[%s527 + $0x81] sm:$0xff]
        %v572 = vld [vmem:[%s527 + $0x91] sm:$0xff]
        %v573 = vld [vmem:[%s527 + $0x99] sm:$0xff]
        %v574 = vld [vmem:[%s527 + $0xa9] sm:$0xff]
        %v575 = vld [vmem:[%s527 + $0xb1] sm:$0xff]
        %v576 = vld [vmem:[%s527 + $0xc1] sm:$0xff]
        %v577 = vld [vmem:[%s527 + $0xc9] sm:$0xff]
        %v578 = vld [vmem:[%s527 + $0xd9] sm:$0xff]
        %v579 = vld [vmem:[%s527 + $0xe1] sm:$0xff]
        %v580 = vld [vmem:[%s527 + $0xf1] sm:$0xff]
        %v581 = vld [vmem:[%s527 + $0xf9] sm:$0xff]
        %v582 = vld [vmem:[%s527 + $0x109] sm:$0xff]
        %v583 = vld [vmem:[%s527 + $0x111] sm:$0xff]
        %v584 = vld [vmem:[%s527 + $0x121] sm:$0xff]
        %v585 = vld [vmem:[%s527 + $0x129] sm:$0xff]
        %v586 = vld [vmem:[%s527 + $0x139] sm:$0xff]
        %v587 = vld [vmem:[%s527 + $0x141] sm:$0xff]
        %v588 = vld [vmem:[%s527 + $0x151] sm:$0xff]
        %v589 = vld [vmem:[%s527 + $0x159] sm:$0xff]
        %v590 = vld [vmem:[%s527 + $0x169] sm:$0xff]
        %v591 = vld [vmem:[%s527 + $0x171] sm:$0xff]
        %v592 = vld [vmem:[%s527 + $0x2] sm:$0xff]
        %v593 = vld [vmem:[%s527 + $0xa] sm:$0xff]
        %v594 = vld [vmem:[%s527 + $0x1a] sm:$0xff]
        %v595 = vld [vmem:[%s527 + $0x22] sm:$0xff]
        %v596 = vld [vmem:[%s527 + $0x32] sm:$0xff]
        %v597 = vld [vmem:[%s527 + $0x3a] sm:$0xff]
        %v598 = vld [vmem:[%s527 + $0x4a] sm:$0xff]
        %v599 = vld [vmem:[%s527 + $0x52] sm:$0xff]
        %v600 = vld [vmem:[%s527 + $0x62] sm:$0xff]
        %v601 = vld [vmem:[%s527 + $0x6a] sm:$0xff]
        %v602 = vld [vmem:[%s527 + $0x7a] sm:$0xff]
        %v603 = vld [vmem:[%s527 + $0x82] sm:$0xff]
        %v604 = vld [vmem:[%s527 + $0x92] sm:$0xff]
        %v605 = vld [vmem:[%s527 + $0x9a] sm:$0xff]
        %v606 = vld [vmem:[%s527 + $0xaa] sm:$0xff]
        %v607 = vld [vmem:[%s527 + $0xb2] sm:$0xff]
        %v608 = vld [vmem:[%s527 + $0xc2] sm:$0xff]
        %v609 = vld [vmem:[%s527 + $0xca] sm:$0xff]
        %v610 = vld [vmem:[%s527 + $0xda] sm:$0xff]
        %v611 = vld [vmem:[%s527 + $0xe2] sm:$0xff]
        %v612 = vld [vmem:[%s527 + $0xf2] sm:$0xff]
        %v613 = vld [vmem:[%s527 + $0xfa] sm:$0xff]
        %v614 = vld [vmem:[%s527 + $0x10a] sm:$0xff]
        %v615 = vld [vmem:[%s527 + $0x112] sm:$0xff]
        %v616 = vld [vmem:[%s527 + $0x122] sm:$0xff]
        %v617 = vld [vmem:[%s527 + $0x12a] sm:$0xff]
        %v618 = vld [vmem:[%s527 + $0x13a] sm:$0xff]
        %v619 = vld [vmem:[%s527 + $0x142] sm:$0xff]
        %v620 = vld [vmem:[%s527 + $0x152] sm:$0xff]
        %v621 = vld [vmem:[%s527 + $0x15a] sm:$0xff]
        %v622 = vld [vmem:[%s527 + $0x16a] sm:$0xff]
        %v623 = vld [vmem:[%s527 + $0x172] sm:$0xff]
        %v624 = vld [vmem:[#allocation6] sm:$0xff]
        %v625 = vld [vmem:[#allocation6 + $0x8] sm:$0xff]
        %v626 = vld [vmem:[#allocation6 + $0x10] sm:$0xff]
        %v627 = vld [vmem:[#allocation6 + $0x18] sm:$0xff]
        %v628 = vld [vmem:[#allocation6 + $0x20] sm:$0xff]
        %v629 = vld [vmem:[#allocation6 + $0x28] sm:$0xff]
        %v630 = vld [vmem:[#allocation6 + $0x30] sm:$0xff]
        %v631 = vld [vmem:[#allocation6 + $0x38] sm:$0xff]
        %v632 = vld [vmem:[#allocation6 + $0x40] sm:$0xff]
        %v633 = vld [vmem:[#allocation6 + $0x48] sm:$0xff]
        %v634 = vld [vmem:[#allocation6 + $0x50] sm:$0xff]
        %v635 = vld [vmem:[#allocation6 + $0x58] sm:$0xff]
        %v636 = vld [vmem:[#allocation6 + $0x60] sm:$0xff]
        %v637 = vld [vmem:[#allocation6 + $0x68] sm:$0xff]
        %v638 = vld [vmem:[#allocation6 + $0x70] sm:$0xff]
        %v639 = vld [vmem:[#allocation6 + $0x78] sm:$0xff]
        %v640 = vld [vmem:[#allocation6 + $0x80] sm:$0xff]
        %v641 = vld [vmem:[#allocation6 + $0x88] sm:$0xff]
        %v642 = vld [vmem:[#allocation6 + $0x90] sm:$0xff]
        %v643 = vld [vmem:[#allocation6 + $0x98] sm:$0xff]
        %v644 = vld [vmem:[#allocation6 + $0xa0] sm:$0xff]
        %v645 = vld [vmem:[#allocation6 + $0xa8] sm:$0xff]
        %v646 = vld [vmem:[#allocation6 + $0xb0] sm:$0xff]
        %v647 = vld [vmem:[#allocation6 + $0xb8] sm:$0xff]
        %v648 = vld [vmem:[#allocation6 + $0xc0] sm:$0xff]
        %v649 = vld [vmem:[#allocation6 + $0xc8] sm:$0xff]
        %v650 = vld [vmem:[#allocation6 + $0xd0] sm:$0xff]
        %v651 = vld [vmem:[#allocation6 + $0xd8] sm:$0xff]
        %v652 = vld [vmem:[#allocation6 + $0xe0] sm:$0xff]
        %v653 = vld [vmem:[#allocation6 + $0xe8] sm:$0xff]
        %v654 = vld [vmem:[#allocation6 + $0xf0] sm:$0xff]
        %v655 = vld [vmem:[#allocation6 + $0xf8] sm:$0xff]
        %v656 = vld [vmem:[#allocation6 + $0x100] sm:$0xff]
        %v657 = vld [vmem:[#allocation6 + $0x108] sm:$0xff]
        %v658 = vld [vmem:[#allocation6 + $0x110] sm:$0xff]
        %v659 = vld [vmem:[#allocation6 + $0x118] sm:$0xff]
        %v660 = vld [vmem:[#allocation6 + $0x120] sm:$0xff]
        %v661 = vld [vmem:[#allocation6 + $0x128] sm:$0xff]
        %v662 = vld [vmem:[#allocation6 + $0x130] sm:$0xff]
        %v663 = vld [vmem:[#allocation6 + $0x138] sm:$0xff]
        %v664 = vld [vmem:[#allocation6 + $0x140] sm:$0xff]
        %v665 = vld [vmem:[#allocation6 + $0x148] sm:$0xff]
        %v666 = vld [vmem:[#allocation6 + $0x150] sm:$0xff]
        %v667 = vld [vmem:[#allocation6 + $0x158] sm:$0xff]
        %v668 = vld [vmem:[#allocation6 + $0x160] sm:$0xff]
        %v669 = vld [vmem:[#allocation6 + $0x168] sm:$0xff]
        %v670 = vld [vmem:[#allocation6 + $0x170] sm:$0xff]
        %v671 = vld [vmem:[#allocation6 + $0x178] sm:$0xff]
        %v672 = vld [vmem:[#allocation6 + $0x180] sm:$0xff]
        %v673 = vld [vmem:[#allocation6 + $0x188] sm:$0xff]
        %v674 = vld [vmem:[#allocation6 + $0x190] sm:$0xff]
        %v675 = vld [vmem:[#allocation6 + $0x198] sm:$0xff]
        %v676 = vld [vmem:[#allocation6 + $0x1a0] sm:$0xff]
        %v677 = vld [vmem:[#allocation6 + $0x1a8] sm:$0xff]
        %v678 = vld [vmem:[#allocation6 + $0x1b0] sm:$0xff]
        %v679 = vld [vmem:[#allocation6 + $0x1b8] sm:$0xff]
        %v680 = vld [vmem:[#allocation6 + $0x1c0] sm:$0xff]
        %v681 = vld [vmem:[#allocation6 + $0x1c8] sm:$0xff]
        %v682 = vld [vmem:[#allocation6 + $0x1d0] sm:$0xff]
        %v683 = vld [vmem:[#allocation6 + $0x1d8] sm:$0xff]
        %v684 = vld [vmem:[#allocation6 + $0x1e0] sm:$0xff]
        %v685 = vld [vmem:[#allocation6 + $0x1e8] sm:$0xff]
        %v686 = vld [vmem:[#allocation6 + $0x1f0] sm:$0xff]
        %v687 = vld [vmem:[#allocation6 + $0x1f8] sm:$0xff]
        %v688 = vld [vmem:[#allocation6 + $0x200] sm:$0xff]
        %v689 = vld [vmem:[#allocation6 + $0x208] sm:$0xff]
        %v690 = vld [vmem:[#allocation6 + $0x210] sm:$0xff]
        %v691 = vld [vmem:[#allocation6 + $0x218] sm:$0xff]
        %v692 = vld [vmem:[#allocation6 + $0x220] sm:$0xff]
        %v693 = vld [vmem:[#allocation6 + $0x228] sm:$0xff]
        %v694 = vld [vmem:[#allocation6 + $0x230] sm:$0xff]
        %v695 = vld [vmem:[#allocation6 + $0x238] sm:$0xff]
        %v696 = vld [vmem:[#allocation6 + $0x240] sm:$0xff]
        %v697 = vld [vmem:[#allocation6 + $0x248] sm:$0xff]
        %v698 = vld [vmem:[#allocation6 + $0x250] sm:$0xff]
        %v699 = vld [vmem:[#allocation6 + $0x258] sm:$0xff]
        %v700 = vld [vmem:[#allocation6 + $0x260] sm:$0xff]
        %v701 = vld [vmem:[#allocation6 + $0x268] sm:$0xff]
        %v702 = vld [vmem:[#allocation6 + $0x270] sm:$0xff]
        %v703 = vld [vmem:[#allocation6 + $0x278] sm:$0xff]
        %v704 = vld [vmem:[#allocation6 + $0x280] sm:$0xff]
        %v705 = vld [vmem:[#allocation6 + $0x288] sm:$0xff]
        %v706 = vld [vmem:[#allocation6 + $0x290] sm:$0xff]
        %v707 = vld [vmem:[#allocation6 + $0x298] sm:$0xff]
        %v708 = vld [vmem:[#allocation6 + $0x2a0] sm:$0xff]
        %v709 = vld [vmem:[#allocation6 + $0x2a8] sm:$0xff]
        %v710 = vld [vmem:[#allocation6 + $0x2b0] sm:$0xff]
        %v711 = vld [vmem:[#allocation6 + $0x2b8] sm:$0xff]
        %v712 = vld [vmem:[#allocation6 + $0x2c0] sm:$0xff]
        %v713 = vld [vmem:[#allocation6 + $0x2c8] sm:$0xff]
        %v714 = vld [vmem:[#allocation6 + $0x2d0] sm:$0xff]
        %v715 = vld [vmem:[#allocation6 + $0x2d8] sm:$0xff]
        %v716 = vld [vmem:[#allocation6 + $0x2e0] sm:$0xff]
        %v717 = vld [vmem:[#allocation6 + $0x2e8] sm:$0xff]
        %v718 = vld [vmem:[#allocation6 + $0x2f0] sm:$0xff]
        %v719 = vld [vmem:[#allocation6 + $0x2f8] sm:$0xff]
        %v720 = vld [vmem:[#allocation6 + $0x300] sm:$0xff]
        %v721 = vld [vmem:[#allocation6 + $0x308] sm:$0xff]
        %v722 = vld [vmem:[#allocation6 + $0x310] sm:$0xff]
        %v723 = vld [vmem:[#allocation6 + $0x318] sm:$0xff]
        %v724 = vld [vmem:[#allocation6 + $0x320] sm:$0xff]
        %v725 = vld [vmem:[#allocation6 + $0x328] sm:$0xff]
        %v726 = vld [vmem:[#allocation6 + $0x330] sm:$0xff]
        %v727 = vld [vmem:[#allocation6 + $0x338] sm:$0xff]
        %v728 = vld [vmem:[#allocation6 + $0x340] sm:$0xff]
        %v729 = vld [vmem:[#allocation6 + $0x348] sm:$0xff]
        %v730 = vld [vmem:[#allocation6 + $0x350] sm:$0xff]
        %v731 = vld [vmem:[#allocation6 + $0x358] sm:$0xff]
        %v732 = vld [vmem:[#allocation6 + $0x360] sm:$0xff]
        %v733 = vld [vmem:[#allocation6 + $0x368] sm:$0xff]
        %v734 = vld [vmem:[#allocation6 + $0x370] sm:$0xff]
        %v735 = vld [vmem:[#allocation6 + $0x378] sm:$0xff]
        %v736 = vld [vmem:[#allocation6 + $0x380] sm:$0xff]
        %v737 = vld [vmem:[#allocation6 + $0x388] sm:$0xff]
        %v738 = vld [vmem:[#allocation6 + $0x390] sm:$0xff]
        %v739 = vld [vmem:[#allocation6 + $0x398] sm:$0xff]
        %v740 = vld [vmem:[#allocation6 + $0x3a0] sm:$0xff]
        %v741 = vld [vmem:[#allocation6 + $0x3a8] sm:$0xff]
        %v742 = vld [vmem:[#allocation6 + $0x3b0] sm:$0xff]
        %v743 = vld [vmem:[#allocation6 + $0x3b8] sm:$0xff]
        %v744 = vld [vmem:[#allocation6 + $0x3c0] sm:$0xff]
        %v745 = vld [vmem:[#allocation6 + $0x3c8] sm:$0xff]
        %v746 = vld [vmem:[#allocation6 + $0x3d0] sm:$0xff]
        %v747 = vld [vmem:[#allocation6 + $0x3d8] sm:$0xff]
        %v748 = vld [vmem:[#allocation6 + $0x3e0] sm:$0xff]
        %v749 = vld [vmem:[#allocation6 + $0x3e8] sm:$0xff]
        %v750 = vld [vmem:[#allocation6 + $0x3f0] sm:$0xff]
        %v751 = vld [vmem:[#allocation6 + $0x3f8] sm:$0xff]
        %v752 = vld [vmem:[#allocation6 + $0x400] sm:$0xff]
        %v753 = vld [vmem:[#allocation6 + $0x408] sm:$0xff]
        %v754 = vld [vmem:[#allocation6 + $0x410] sm:$0xff]
        %v755 = vld [vmem:[#allocation6 + $0x418] sm:$0xff]
        %v756 = vld [vmem:[#allocation6 + $0x420] sm:$0xff]
        %v757 = vld [vmem:[#allocation6 + $0x428] sm:$0xff]
        %v758 = vld [vmem:[#allocation6 + $0x430] sm:$0xff]
        %v759 = vld [vmem:[#allocation6 + $0x438] sm:$0xff]
        %v760 = vld [vmem:[#allocation6 + $0x440] sm:$0xff]
        %v761 = vld [vmem:[#allocation6 + $0x448] sm:$0xff]
        %v762 = vld [vmem:[#allocation6 + $0x450] sm:$0xff]
        %v763 = vld [vmem:[#allocation6 + $0x458] sm:$0xff]
        %v764 = vld [vmem:[#allocation6 + $0x460] sm:$0xff]
        %v765 = vld [vmem:[#allocation6 + $0x468] sm:$0xff]
        %v766 = vld [vmem:[#allocation6 + $0x470] sm:$0xff]
        %v767 = vld [vmem:[#allocation6 + $0x478] sm:$0xff]
        %v768 = vld [vmem:[%s2] sm:$0x1]
        %v770 = vlaneseq
        %v771 = vshrl.u32 %v770, 7
        %v772 = vsub.s32 0, %v771
        %v773 = vrot.slane %v768, %v772
        %775 = vmatprep.subr.mxu0 0.0
        %776 = vmatpush1.msra.mxu0 %v639
        %777 = vmatprep.subr.mxu0 0.0
        %778 = vmatpush1.msra.mxu0 %v638
        %779 = vmatprep.subr.mxu0 0.0
        %780 = vmatpush1.msra.mxu0 %v637
        %781 = vmatprep.subr.mxu0 0.0
        %782 = vmatpush1.msra.mxu0 %v636
        %783 = vmatprep.subr.mxu0 0.0
        %784 = vmatpush1.msra.mxu0 %v635
        %785 = vmatprep.subr.mxu0 0.0
        %786 = vmatpush1.msra.mxu0 %v634
        %787 = vmatprep.subr.mxu0 0.0
        %788 = vmatpush1.msra.mxu0 %v633
        %789 = vmatprep.subr.mxu0 0.0
        %790 = vmatpush1.msra.mxu0 %v632
        %791 = vmatprep.subr.mxu0 0.0
        %792 = vmatpush1.msra.mxu0 %v631
        %793 = vmatprep.subr.mxu0 0.0
        %794 = vmatpush1.msra.mxu0 %v630
        %795 = vmatprep.subr.mxu0 0.0
        %796 = vmatpush1.msra.mxu0 %v629
        %797 = vmatprep.subr.mxu0 0.0
        %798 = vmatpush1.msra.mxu0 %v628
        %799 = vmatprep.subr.mxu0 0.0
        %800 = vmatpush1.msra.mxu0 %v627
        %801 = vmatprep.subr.mxu0 0.0
        %802 = vmatpush1.msra.mxu0 %v626
        %803 = vmatprep.subr.mxu0 0.0
        %804 = vmatpush1.msra.mxu0 %v625
        %805 = vmatprep.subr.mxu0 0.0
        %806 = vmatpush1.msra.mxu0 %v624
        %807 = vmatprep.subr.mxu0 0.0
        %808 = vmatpush2.msra.mxu0 %v655
        %809 = vmatprep.subr.mxu0 0.0
        %810 = vmatpush2.msra.mxu0 %v654
        %811 = vmatprep.subr.mxu0 0.0
        %812 = vmatpush2.msra.mxu0 %v653
        %813 = vmatprep.subr.mxu0 0.0
        %814 = vmatpush2.msra.mxu0 %v652
        %815 = vmatprep.subr.mxu0 0.0
        %816 = vmatpush2.msra.mxu0 %v651
        %817 = vmatprep.subr.mxu0 0.0
        %818 = vmatpush2.msra.mxu0 %v650
        %819 = vmatprep.subr.mxu0 0.0
        %820 = vmatpush2.msra.mxu0 %v649
        %821 = vmatprep.subr.mxu0 0.0
        %822 = vmatpush2.msra.mxu0 %v648
        %823 = vmatprep.subr.mxu0 0.0
        %824 = vmatpush2.msra.mxu0 %v647
        %825 = vmatprep.subr.mxu0 0.0
        %826 = vmatpush2.msra.mxu0 %v646
        %827 = vmatprep.subr.mxu0 0.0
        %828 = vmatpush2.msra.mxu0 %v645
        %829 = vmatprep.subr.mxu0 0.0
        %830 = vmatpush2.msra.mxu0 %v644
        %831 = vmatprep.subr.mxu0 0.0
        %832 = vmatpush2.msra.mxu0 %v643
        %833 = vmatprep.subr.mxu0 0.0
        %834 = vmatpush2.msra.mxu0 %v642
        %835 = vmatprep.subr.mxu0 0.0
        %836 = vmatpush2.msra.mxu0 %v641
        %837 = vmatprep.subr.mxu0 0.0
        %838 = vmatpush2.msra.mxu0 %v640
        %839 = vmatprep.mubr.f32.mxu0 %v367
        %840 = vmatmul.mubr.f32.gmra.mxu0 %v335
        %v841 = vpop.f32.mrf.mxu0
        %v842 = vadd.f32 %v773, %v841
        %v843 = vpop.f32.mrf.mxu0
        %844 = vmatprep.mubr.f32.mxu0 %v368
        %845 = vmatmul.mubr.f32.gmra.mxu0 %v336
        %v846 = vpop.f32.mrf.mxu0
        %v847 = vadd.f32 %v773, %v846
        %v848 = vpop.f32.mrf.mxu0
        %849 = vmatprep.mubr.f32.mxu0 %v369
        %850 = vmatmul.mubr.f32.gmra.mxu0 %v337
        %v851 = vpop.f32.mrf.mxu0
        %v852 = vadd.f32 %v773, %v851
        %v853 = vpop.f32.mrf.mxu0
        %854 = vmatprep.mubr.f32.mxu0 %v370
        %855 = vmatmul.mubr.f32.gmra.mxu0 %v338
        %v856 = vpop.f32.mrf.mxu0
        %v857 = vadd.f32 %v773, %v856
        %v858 = vpop.f32.mrf.mxu0
        %859 = vmatprep.mubr.f32.mxu0 %v371
        %860 = vmatmul.mubr.f32.gmra.mxu0 %v339
        %v861 = vpop.f32.mrf.mxu0
        %v862 = vadd.f32 %v773, %v861
        %v863 = vpop.f32.mrf.mxu0
        %864 = vmatprep.mubr.f32.mxu0 %v372
        %865 = vmatmul.mubr.f32.gmra.mxu0 %v340
        %v866 = vpop.f32.mrf.mxu0
        %v867 = vadd.f32 %v773, %v866
        %v868 = vpop.f32.mrf.mxu0
        %869 = vmatprep.mubr.f32.mxu0 %v373
        %870 = vmatmul.mubr.f32.gmra.mxu0 %v341
        %v871 = vpop.f32.mrf.mxu0
        %v872 = vadd.f32 %v773, %v871
        %v873 = vpop.f32.mrf.mxu0
        %874 = vmatprep.mubr.f32.mxu0 %v374
        %875 = vmatmul.mubr.f32.gmra.mxu0 %v342
        %v876 = vpop.f32.mrf.mxu0
        %v877 = vadd.f32 %v773, %v876
        %v878 = vpop.f32.mrf.mxu0
        %879 = vmatprep.mubr.f32.mxu0 %v375
        %880 = vmatmul.mubr.f32.gmra.mxu0 %v343
        %v881 = vpop.f32.mrf.mxu0
        %v882 = vadd.f32 %v773, %v881
        %v883 = vpop.f32.mrf.mxu0
        %884 = vmatprep.mubr.f32.mxu0 %v376
        %885 = vmatmul.mubr.f32.gmra.mxu0 %v344
        %v886 = vpop.f32.mrf.mxu0
        %v887 = vadd.f32 %v773, %v886
        %v888 = vpop.f32.mrf.mxu0
        %889 = vmatprep.mubr.f32.mxu0 %v377
        %890 = vmatmul.mubr.f32.gmra.mxu0 %v345
        %v891 = vpop.f32.mrf.mxu0
        %v892 = vadd.f32 %v773, %v891
        %v893 = vpop.f32.mrf.mxu0
        %894 = vmatprep.mubr.f32.mxu0 %v378
        %895 = vmatmul.mubr.f32.gmra.mxu0 %v346
        %v896 = vpop.f32.mrf.mxu0
        %v897 = vadd.f32 %v773, %v896
        %v898 = vpop.f32.mrf.mxu0
        %899 = vmatprep.mubr.f32.mxu0 %v379
        %900 = vmatmul.mubr.f32.gmra.mxu0 %v347
        %v901 = vpop.f32.mrf.mxu0
        %v902 = vadd.f32 %v773, %v901
        %v903 = vpop.f32.mrf.mxu0
        %904 = vmatprep.mubr.f32.mxu0 %v380
        %905 = vmatmul.mubr.f32.gmra.mxu0 %v348
        %v906 = vpop.f32.mrf.mxu0
        %v907 = vadd.f32 %v773, %v906
        %v908 = vpop.f32.mrf.mxu0
        %909 = vmatprep.mubr.f32.mxu0 %v381
        %910 = vmatmul.mubr.f32.gmra.mxu0 %v349
        %v911 = vpop.f32.mrf.mxu0
        %v912 = vadd.f32 %v773, %v911
        %v913 = vpop.f32.mrf.mxu0
        %914 = vmatprep.mubr.f32.mxu0 %v382
        %915 = vmatmul.mubr.f32.gmra.mxu0 %v350
        %v916 = vpop.f32.mrf.mxu0
        %v917 = vadd.f32 %v773, %v916
        %v918 = vpop.f32.mrf.mxu0
        %919 = vmatprep.mubr.f32.mxu0 %v383
        %920 = vmatmul.mubr.f32.gmra.mxu0 %v351
        %v921 = vpop.f32.mrf.mxu0
        %v922 = vadd.f32 %v773, %v921
        %v923 = vpop.f32.mrf.mxu0
        %924 = vmatprep.mubr.f32.mxu0 %v384
        %925 = vmatmul.mubr.f32.gmra.mxu0 %v352
        %v926 = vpop.f32.mrf.mxu0
        %v927 = vadd.f32 %v773, %v926
        %v928 = vpop.f32.mrf.mxu0
        %929 = vmatprep.mubr.f32.mxu0 %v385
        %930 = vmatmul.mubr.f32.gmra.mxu0 %v353
        %v931 = vpop.f32.mrf.mxu0
        %v932 = vadd.f32 %v773, %v931
        %v933 = vpop.f32.mrf.mxu0
        %934 = vmatprep.mubr.f32.mxu0 %v386
        %935 = vmatmul.mubr.f32.gmra.mxu0 %v354
        %v936 = vpop.f32.mrf.mxu0
        %v937 = vadd.f32 %v773, %v936
        %v938 = vpop.f32.mrf.mxu0
        %939 = vmatprep.mubr.f32.mxu0 %v387
        %940 = vmatmul.mubr.f32.gmra.mxu0 %v355
        %v941 = vpop.f32.mrf.mxu0
        %v942 = vadd.f32 %v773, %v941
        %v943 = vpop.f32.mrf.mxu0
        %944 = vmatprep.mubr.f32.mxu0 %v388
        %945 = vmatmul.mubr.f32.gmra.mxu0 %v356
        %v946 = vpop.f32.mrf.mxu0
        %v947 = vadd.f32 %v773, %v946
        %v948 = vpop.f32.mrf.mxu0
        %949 = vmatprep.mubr.f32.mxu0 %v389
        %950 = vmatmul.mubr.f32.gmra.mxu0 %v357
        %v951 = vpop.f32.mrf.mxu0
        %v952 = vadd.f32 %v773, %v951
        %v953 = vpop.f32.mrf.mxu0
        %954 = vmatprep.mubr.f32.mxu0 %v390
        %955 = vmatmul.mubr.f32.gmra.mxu0 %v358
        %v956 = vpop.f32.mrf.mxu0
        %v957 = vadd.f32 %v773, %v956
        %v958 = vpop.f32.mrf.mxu0
        %959 = vmatprep.mubr.f32.mxu0 %v391
        %960 = vmatmul.mubr.f32.gmra.mxu0 %v359
        %v961 = vpop.f32.mrf.mxu0
        %v962 = vadd.f32 %v773, %v961
        %v963 = vpop.f32.mrf.mxu0
        %964 = vmatprep.mubr.f32.mxu0 %v392
        %965 = vmatmul.mubr.f32.gmra.mxu0 %v360
        %v966 = vpop.f32.mrf.mxu0
        %v967 = vadd.f32 %v773, %v966
        %v968 = vpop.f32.mrf.mxu0
        %969 = vmatprep.mubr.f32.mxu0 %v393
        %970 = vmatmul.mubr.f32.gmra.mxu0 %v361
        %v971 = vpop.f32.mrf.mxu0
        %v972 = vadd.f32 %v773, %v971
        %v973 = vpop.f32.mrf.mxu0
        %974 = vmatprep.mubr.f32.mxu0 %v394
        %975 = vmatmul.mubr.f32.gmra.mxu0 %v362
        %v976 = vpop.f32.mrf.mxu0
        %v977 = vadd.f32 %v773, %v976
        %v978 = vpop.f32.mrf.mxu0
        %979 = vmatprep.mubr.f32.mxu0 %v395
        %980 = vmatmul.mubr.f32.gmra.mxu0 %v363
        %v981 = vpop.f32.mrf.mxu0
        %v982 = vadd.f32 %v773, %v981
        %v983 = vpop.f32.mrf.mxu0
        %984 = vmatprep.mubr.f32.mxu0 %v396
        %985 = vmatmul.mubr.f32.gmra.mxu0 %v364
        %v986 = vpop.f32.mrf.mxu0
        %v987 = vadd.f32 %v773, %v986
        %v988 = vpop.f32.mrf.mxu0
        %989 = vmatprep.mubr.f32.mxu0 %v397
        %990 = vmatmul.mubr.f32.gmra.mxu0 %v365
        %v991 = vpop.f32.mrf.mxu0
        %v992 = vadd.f32 %v773, %v991
        %v993 = vpop.f32.mrf.mxu0
        %994 = vmatprep.mubr.f32.mxu0 %v398
        %995 = vmatmul.mubr.f32.gmra.mxu0 %v366
        %v996 = vpop.f32.mrf.mxu0
        %v997 = vadd.f32 %v773, %v996
        %v998 = vpop.f32.mrf.mxu0
        %999 = vdwg.mxu0
        %1000 = vmatprep.subr.mxu0 0.0
        %1001 = vmatpush1.msra.mxu0 %v671
        %1002 = vmatprep.subr.mxu0 0.0
        %1003 = vmatpush1.msra.mxu0 %v670
        %1004 = vmatprep.subr.mxu0 0.0
        %1005 = vmatpush1.msra.mxu0 %v669
        %1006 = vmatprep.subr.mxu0 0.0
        %1007 = vmatpush1.msra.mxu0 %v668
        %1008 = vmatprep.subr.mxu0 0.0
        %1009 = vmatpush1.msra.mxu0 %v667
        %1010 = vmatprep.subr.mxu0 0.0
        %1011 = vmatpush1.msra.mxu0 %v666
        %1012 = vmatprep.subr.mxu0 0.0
        %1013 = vmatpush1.msra.mxu0 %v665
        %1014 = vmatprep.subr.mxu0 0.0
        %1015 = vmatpush1.msra.mxu0 %v664
        %1016 = vmatprep.subr.mxu0 0.0
        %1017 = vmatpush1.msra.mxu0 %v663
        %1018 = vmatprep.subr.mxu0 0.0
        %1019 = vmatpush1.msra.mxu0 %v662
        %1020 = vmatprep.subr.mxu0 0.0
        %1021 = vmatpush1.msra.mxu0 %v661
        %1022 = vmatprep.subr.mxu0 0.0
        %1023 = vmatpush1.msra.mxu0 %v660
        %1024 = vmatprep.subr.mxu0 0.0
        %1025 = vmatpush1.msra.mxu0 %v659
        %1026 = vmatprep.subr.mxu0 0.0
        %1027 = vmatpush1.msra.mxu0 %v658
        %1028 = vmatprep.subr.mxu0 0.0
        %1029 = vmatpush1.msra.mxu0 %v657
        %1030 = vmatprep.subr.mxu0 0.0
        %1031 = vmatpush1.msra.mxu0 %v656
        %1032 = vmatprep.subr.mxu0 0.0
        %1033 = vmatpush2.msra.mxu0 %v687
        %1034 = vmatprep.subr.mxu0 0.0
        %1035 = vmatpush2.msra.mxu0 %v686
        %1036 = vmatprep.subr.mxu0 0.0
        %1037 = vmatpush2.msra.mxu0 %v685
        %1038 = vmatprep.subr.mxu0 0.0
        %1039 = vmatpush2.msra.mxu0 %v684
        %1040 = vmatprep.subr.mxu0 0.0
        %1041 = vmatpush2.msra.mxu0 %v683
        %1042 = vmatprep.subr.mxu0 0.0
        %1043 = vmatpush2.msra.mxu0 %v682
        %1044 = vmatprep.subr.mxu0 0.0
        %1045 = vmatpush2.msra.mxu0 %v681
        %1046 = vmatprep.subr.mxu0 0.0
        %1047 = vmatpush2.msra.mxu0 %v680
        %1048 = vmatprep.subr.mxu0 0.0
        %1049 = vmatpush2.msra.mxu0 %v679
        %1050 = vmatprep.subr.mxu0 0.0
        %1051 = vmatpush2.msra.mxu0 %v678
        %1052 = vmatprep.subr.mxu0 0.0
        %1053 = vmatpush2.msra.mxu0 %v677
        %1054 = vmatprep.subr.mxu0 0.0
        %1055 = vmatpush2.msra.mxu0 %v676
        %1056 = vmatprep.subr.mxu0 0.0
        %1057 = vmatpush2.msra.mxu0 %v675
        %1058 = vmatprep.subr.mxu0 0.0
        %1059 = vmatpush2.msra.mxu0 %v674
        %1060 = vmatprep.subr.mxu0 0.0
        %1061 = vmatpush2.msra.mxu0 %v673
        %1062 = vmatprep.subr.mxu0 0.0
        %1063 = vmatpush2.msra.mxu0 %v672
        %1064 = vmatprep.mubr.f32.mxu0 %v431
        %1065 = vmatmul.mubr.f32.gmra.mxu0 %v399
        %v1066 = vpop.f32.mrf.mxu0
        %v1067 = vadd.f32 %v842, %v1066
        %v1068 = vpop.f32.mrf.mxu0
        %1069 = vmatprep.mubr.f32.mxu0 %v432
        %1070 = vmatmul.mubr.f32.gmra.mxu0 %v400
        %v1071 = vpop.f32.mrf.mxu0
        %v1072 = vadd.f32 %v847, %v1071
        %v1073 = vpop.f32.mrf.mxu0
        %1074 = vmatprep.mubr.f32.mxu0 %v433
        %1075 = vmatmul.mubr.f32.gmra.mxu0 %v401
        %v1076 = vpop.f32.mrf.mxu0
        %v1077 = vadd.f32 %v852, %v1076
        %v1078 = vpop.f32.mrf.mxu0
        %1079 = vmatprep.mubr.f32.mxu0 %v434
        %1080 = vmatmul.mubr.f32.gmra.mxu0 %v402
        %v1081 = vpop.f32.mrf.mxu0
        %v1082 = vadd.f32 %v857, %v1081
        %v1083 = vpop.f32.mrf.mxu0
        %1084 = vmatprep.mubr.f32.mxu0 %v435
        %1085 = vmatmul.mubr.f32.gmra.mxu0 %v403
        %v1086 = vpop.f32.mrf.mxu0
        %v1087 = vadd.f32 %v862, %v1086
        %v1088 = vpop.f32.mrf.mxu0
        %1089 = vmatprep.mubr.f32.mxu0 %v436
        %1090 = vmatmul.mubr.f32.gmra.mxu0 %v404
        %v1091 = vpop.f32.mrf.mxu0
        %v1092 = vadd.f32 %v867, %v1091
        %v1093 = vpop.f32.mrf.mxu0
        %1094 = vmatprep.mubr.f32.mxu0 %v437
        %1095 = vmatmul.mubr.f32.gmra.mxu0 %v405
        %v1096 = vpop.f32.mrf.mxu0
        %v1097 = vadd.f32 %v872, %v1096
        %v1098 = vpop.f32.mrf.mxu0
        %1099 = vmatprep.mubr.f32.mxu0 %v438
        %1100 = vmatmul.mubr.f32.gmra.mxu0 %v406
        %v1101 = vpop.f32.mrf.mxu0
        %v1102 = vadd.f32 %v877, %v1101
        %v1103 = vpop.f32.mrf.mxu0
        %1104 = vmatprep.mubr.f32.mxu0 %v439
        %1105 = vmatmul.mubr.f32.gmra.mxu0 %v407
        %v1106 = vpop.f32.mrf.mxu0
        %v1107 = vadd.f32 %v882, %v1106
        %v1108 = vpop.f32.mrf.mxu0
        %1109 = vmatprep.mubr.f32.mxu0 %v440
        %1110 = vmatmul.mubr.f32.gmra.mxu0 %v408
        %v1111 = vpop.f32.mrf.mxu0
        %v1112 = vadd.f32 %v887, %v1111
        %v1113 = vpop.f32.mrf.mxu0
        %1114 = vmatprep.mubr.f32.mxu0 %v441
        %1115 = vmatmul.mubr.f32.gmra.mxu0 %v409
        %v1116 = vpop.f32.mrf.mxu0
        %v1117 = vadd.f32 %v892, %v1116
        %v1118 = vpop.f32.mrf.mxu0
        %1119 = vmatprep.mubr.f32.mxu0 %v442
        %1120 = vmatmul.mubr.f32.gmra.mxu0 %v410
        %v1121 = vpop.f32.mrf.mxu0
        %v1122 = vadd.f32 %v897, %v1121
        %v1123 = vpop.f32.mrf.mxu0
        %1124 = vmatprep.mubr.f32.mxu0 %v443
        %1125 = vmatmul.mubr.f32.gmra.mxu0 %v411
        %v1126 = vpop.f32.mrf.mxu0
        %v1127 = vadd.f32 %v902, %v1126
        %v1128 = vpop.f32.mrf.mxu0
        %1129 = vmatprep.mubr.f32.mxu0 %v444
        %1130 = vmatmul.mubr.f32.gmra.mxu0 %v412
        %v1131 = vpop.f32.mrf.mxu0
        %v1132 = vadd.f32 %v907, %v1131
        %v1133 = vpop.f32.mrf.mxu0
        %1134 = vmatprep.mubr.f32.mxu0 %v445
        %1135 = vmatmul.mubr.f32.gmra.mxu0 %v413
        %v1136 = vpop.f32.mrf.mxu0
        %v1137 = vadd.f32 %v912, %v1136
        %v1138 = vpop.f32.mrf.mxu0
        %1139 = vmatprep.mubr.f32.mxu0 %v446
        %1140 = vmatmul.mubr.f32.gmra.mxu0 %v414
        %v1141 = vpop.f32.mrf.mxu0
        %v1142 = vadd.f32 %v917, %v1141
        %v1143 = vpop.f32.mrf.mxu0
        %1144 = vmatprep.mubr.f32.mxu0 %v447
        %1145 = vmatmul.mubr.f32.gmra.mxu0 %v415
        %v1146 = vpop.f32.mrf.mxu0
        %v1147 = vadd.f32 %v922, %v1146
        %v1148 = vpop.f32.mrf.mxu0
        %1149 = vmatprep.mubr.f32.mxu0 %v448
        %1150 = vmatmul.mubr.f32.gmra.mxu0 %v416
        %v1151 = vpop.f32.mrf.mxu0
        %v1152 = vadd.f32 %v927, %v1151
        %v1153 = vpop.f32.mrf.mxu0
        %1154 = vmatprep.mubr.f32.mxu0 %v449
        %1155 = vmatmul.mubr.f32.gmra.mxu0 %v417
        %v1156 = vpop.f32.mrf.mxu0
        %v1157 = vadd.f32 %v932, %v1156
        %v1158 = vpop.f32.mrf.mxu0
        %1159 = vmatprep.mubr.f32.mxu0 %v450
        %1160 = vmatmul.mubr.f32.gmra.mxu0 %v418
        %v1161 = vpop.f32.mrf.mxu0
        %v1162 = vadd.f32 %v937, %v1161
        %v1163 = vpop.f32.mrf.mxu0
        %1164 = vmatprep.mubr.f32.mxu0 %v451
        %1165 = vmatmul.mubr.f32.gmra.mxu0 %v419
        %v1166 = vpop.f32.mrf.mxu0
        %v1167 = vadd.f32 %v942, %v1166
        %v1168 = vpop.f32.mrf.mxu0
        %1169 = vmatprep.mubr.f32.mxu0 %v452
        %1170 = vmatmul.mubr.f32.gmra.mxu0 %v420
        %v1171 = vpop.f32.mrf.mxu0
        %v1172 = vadd.f32 %v947, %v1171
        %v1173 = vpop.f32.mrf.mxu0
        %1174 = vmatprep.mubr.f32.mxu0 %v453
        %1175 = vmatmul.mubr.f32.gmra.mxu0 %v421
        %v1176 = vpop.f32.mrf.mxu0
        %v1177 = vadd.f32 %v952, %v1176
        %v1178 = vpop.f32.mrf.mxu0
        %1179 = vmatprep.mubr.f32.mxu0 %v454
        %1180 = vmatmul.mubr.f32.gmra.mxu0 %v422
        %v1181 = vpop.f32.mrf.mxu0
        %v1182 = vadd.f32 %v957, %v1181
        %v1183 = vpop.f32.mrf.mxu0
        %1184 = vmatprep.mubr.f32.mxu0 %v455
        %1185 = vmatmul.mubr.f32.gmra.mxu0 %v423
        %v1186 = vpop.f32.mrf.mxu0
        %v1187 = vadd.f32 %v962, %v1186
        %v1188 = vpop.f32.mrf.mxu0
        %1189 = vmatprep.mubr.f32.mxu0 %v456
        %1190 = vmatmul.mubr.f32.gmra.mxu0 %v424
        %v1191 = vpop.f32.mrf.mxu0
        %v1192 = vadd.f32 %v967, %v1191
        %v1193 = vpop.f32.mrf.mxu0
        %1194 = vmatprep.mubr.f32.mxu0 %v457
        %1195 = vmatmul.mubr.f32.gmra.mxu0 %v425
        %v1196 = vpop.f32.mrf.mxu0
        %v1197 = vadd.f32 %v972, %v1196
        %v1198 = vpop.f32.mrf.mxu0
        %1199 = vmatprep.mubr.f32.mxu0 %v458
        %1200 = vmatmul.mubr.f32.gmra.mxu0 %v426
        %v1201 = vpop.f32.mrf.mxu0
        %v1202 = vadd.f32 %v977, %v1201
        %v1203 = vpop.f32.mrf.mxu0
        %1204 = vmatprep.mubr.f32.mxu0 %v459
        %1205 = vmatmul.mubr.f32.gmra.mxu0 %v427
        %v1206 = vpop.f32.mrf.mxu0
        %v1207 = vadd.f32 %v982, %v1206
        %v1208 = vpop.f32.mrf.mxu0
        %1209 = vmatprep.mubr.f32.mxu0 %v460
        %1210 = vmatmul.mubr.f32.gmra.mxu0 %v428
        %v1211 = vpop.f32.mrf.mxu0
        %v1212 = vadd.f32 %v987, %v1211
        %v1213 = vpop.f32.mrf.mxu0
        %1214 = vmatprep.mubr.f32.mxu0 %v461
        %1215 = vmatmul.mubr.f32.gmra.mxu0 %v429
        %v1216 = vpop.f32.mrf.mxu0
        %v1217 = vadd.f32 %v992, %v1216
        %v1218 = vpop.f32.mrf.mxu0
        %1219 = vmatprep.mubr.f32.mxu0 %v462
        %1220 = vmatmul.mubr.f32.gmra.mxu0 %v430
        %v1221 = vpop.f32.mrf.mxu0
        %v1222 = vadd.f32 %v997, %v1221
        %v1223 = vpop.f32.mrf.mxu0
        %1224 = vdwg.mxu0
        %1225 = vmatprep.subr.mxu0 0.0
        %1226 = vmatpush1.msra.mxu0 %v703
        %1227 = vmatprep.subr.mxu0 0.0
        %1228 = vmatpush1.msra.mxu0 %v702
        %1229 = vmatprep.subr.mxu0 0.0
        %1230 = vmatpush1.msra.mxu0 %v701
        %1231 = vmatprep.subr.mxu0 0.0
        %1232 = vmatpush1.msra.mxu0 %v700
        %1233 = vmatprep.subr.mxu0 0.0
        %1234 = vmatpush1.msra.mxu0 %v699
        %1235 = vmatprep.subr.mxu0 0.0
        %1236 = vmatpush1.msra.mxu0 %v698
        %1237 = vmatprep.subr.mxu0 0.0
        %1238 = vmatpush1.msra.mxu0 %v697
        %1239 = vmatprep.subr.mxu0 0.0
        %1240 = vmatpush1.msra.mxu0 %v696
        %1241 = vmatprep.subr.mxu0 0.0
        %1242 = vmatpush1.msra.mxu0 %v695
        %1243 = vmatprep.subr.mxu0 0.0
        %1244 = vmatpush1.msra.mxu0 %v694
        %1245 = vmatprep.subr.mxu0 0.0
        %1246 = vmatpush1.msra.mxu0 %v693
        %1247 = vmatprep.subr.mxu0 0.0
        %1248 = vmatpush1.msra.mxu0 %v692
        %1249 = vmatprep.subr.mxu0 0.0
        %1250 = vmatpush1.msra.mxu0 %v691
        %1251 = vmatprep.subr.mxu0 0.0
        %1252 = vmatpush1.msra.mxu0 %v690
        %1253 = vmatprep.subr.mxu0 0.0
        %1254 = vmatpush1.msra.mxu0 %v689
        %1255 = vmatprep.subr.mxu0 0.0
        %1256 = vmatpush1.msra.mxu0 %v688
        %1257 = vmatprep.subr.mxu0 0.0
        %1258 = vmatpush2.msra.mxu0 %v719
        %1259 = vmatprep.subr.mxu0 0.0
        %1260 = vmatpush2.msra.mxu0 %v718
        %1261 = vmatprep.subr.mxu0 0.0
        %1262 = vmatpush2.msra.mxu0 %v717
        %1263 = vmatprep.subr.mxu0 0.0
        %1264 = vmatpush2.msra.mxu0 %v716
        %1265 = vmatprep.subr.mxu0 0.0
        %1266 = vmatpush2.msra.mxu0 %v715
        %1267 = vmatprep.subr.mxu0 0.0
        %1268 = vmatpush2.msra.mxu0 %v714
        %1269 = vmatprep.subr.mxu0 0.0
        %1270 = vmatpush2.msra.mxu0 %v713
        %1271 = vmatprep.subr.mxu0 0.0
        %1272 = vmatpush2.msra.mxu0 %v712
        %1273 = vmatprep.subr.mxu0 0.0
        %1274 = vmatpush2.msra.mxu0 %v711
        %1275 = vmatprep.subr.mxu0 0.0
        %1276 = vmatpush2.msra.mxu0 %v710
        %1277 = vmatprep.subr.mxu0 0.0
        %1278 = vmatpush2.msra.mxu0 %v709
        %1279 = vmatprep.subr.mxu0 0.0
        %1280 = vmatpush2.msra.mxu0 %v708
        %1281 = vmatprep.subr.mxu0 0.0
        %1282 = vmatpush2.msra.mxu0 %v707
        %1283 = vmatprep.subr.mxu0 0.0
        %1284 = vmatpush2.msra.mxu0 %v706
        %1285 = vmatprep.subr.mxu0 0.0
        %1286 = vmatpush2.msra.mxu0 %v705
        %1287 = vmatprep.subr.mxu0 0.0
        %1288 = vmatpush2.msra.mxu0 %v704
        %1289 = vmatprep.mubr.f32.mxu0 %v495
        %1290 = vmatmul.mubr.f32.gmra.mxu0 %v463
        %v1291 = vpop.f32.mrf.mxu0
        %v1292 = vadd.f32 %v1067, %v1291
        %v1293 = vpop.f32.mrf.mxu0
        %1294 = vmatprep.mubr.f32.mxu0 %v496
        %1295 = vmatmul.mubr.f32.gmra.mxu0 %v464
        %v1296 = vpop.f32.mrf.mxu0
        %v1297 = vadd.f32 %v1072, %v1296
        %v1298 = vpop.f32.mrf.mxu0
        %1299 = vmatprep.mubr.f32.mxu0 %v497
        %1300 = vmatmul.mubr.f32.gmra.mxu0 %v465
        %v1301 = vpop.f32.mrf.mxu0
        %v1302 = vadd.f32 %v1077, %v1301
        %v1303 = vpop.f32.mrf.mxu0
        %1304 = vmatprep.mubr.f32.mxu0 %v498
        %1305 = vmatmul.mubr.f32.gmra.mxu0 %v466
        %v1306 = vpop.f32.mrf.mxu0
        %v1307 = vadd.f32 %v1082, %v1306
        %v1308 = vpop.f32.mrf.mxu0
        %1309 = vmatprep.mubr.f32.mxu0 %v499
        %1310 = vmatmul.mubr.f32.gmra.mxu0 %v467
        %v1311 = vpop.f32.mrf.mxu0
        %v1312 = vadd.f32 %v1087, %v1311
        %v1313 = vpop.f32.mrf.mxu0
        %1314 = vmatprep.mubr.f32.mxu0 %v500
        %1315 = vmatmul.mubr.f32.gmra.mxu0 %v468
        %v1316 = vpop.f32.mrf.mxu0
        %v1317 = vadd.f32 %v1092, %v1316
        %v1318 = vpop.f32.mrf.mxu0
        %1319 = vmatprep.mubr.f32.mxu0 %v501
        %1320 = vmatmul.mubr.f32.gmra.mxu0 %v469
        %v1321 = vpop.f32.mrf.mxu0
        %v1322 = vadd.f32 %v1097, %v1321
        %v1323 = vpop.f32.mrf.mxu0
        %1324 = vmatprep.mubr.f32.mxu0 %v502
        %1325 = vmatmul.mubr.f32.gmra.mxu0 %v470
        %v1326 = vpop.f32.mrf.mxu0
        %v1327 = vadd.f32 %v1102, %v1326
        %v1328 = vpop.f32.mrf.mxu0
        %1329 = vmatprep.mubr.f32.mxu0 %v503
        %1330 = vmatmul.mubr.f32.gmra.mxu0 %v471
        %v1331 = vpop.f32.mrf.mxu0
        %v1332 = vadd.f32 %v1107, %v1331
        %v1333 = vpop.f32.mrf.mxu0
        %1334 = vmatprep.mubr.f32.mxu0 %v504
        %1335 = vmatmul.mubr.f32.gmra.mxu0 %v472
        %v1336 = vpop.f32.mrf.mxu0
        %v1337 = vadd.f32 %v1112, %v1336
        %v1338 = vpop.f32.mrf.mxu0
        %1339 = vmatprep.mubr.f32.mxu0 %v505
        %1340 = vmatmul.mubr.f32.gmra.mxu0 %v473
        %v1341 = vpop.f32.mrf.mxu0
        %v1342 = vadd.f32 %v1117, %v1341
        %v1343 = vpop.f32.mrf.mxu0
        %1344 = vmatprep.mubr.f32.mxu0 %v506
        %1345 = vmatmul.mubr.f32.gmra.mxu0 %v474
        %v1346 = vpop.f32.mrf.mxu0
        %v1347 = vadd.f32 %v1122, %v1346
        %v1348 = vpop.f32.mrf.mxu0
        %1349 = vmatprep.mubr.f32.mxu0 %v507
        %1350 = vmatmul.mubr.f32.gmra.mxu0 %v475
        %v1351 = vpop.f32.mrf.mxu0
        %v1352 = vadd.f32 %v1127, %v1351
        %v1353 = vpop.f32.mrf.mxu0
        %1354 = vmatprep.mubr.f32.mxu0 %v508
        %1355 = vmatmul.mubr.f32.gmra.mxu0 %v476
        %v1356 = vpop.f32.mrf.mxu0
        %v1357 = vadd.f32 %v1132, %v1356
        %v1358 = vpop.f32.mrf.mxu0
        %1359 = vmatprep.mubr.f32.mxu0 %v509
        %1360 = vmatmul.mubr.f32.gmra.mxu0 %v477
        %v1361 = vpop.f32.mrf.mxu0
        %v1362 = vadd.f32 %v1137, %v1361
        %v1363 = vpop.f32.mrf.mxu0
        %1364 = vmatprep.mubr.f32.mxu0 %v510
        %1365 = vmatmul.mubr.f32.gmra.mxu0 %v478
        %v1366 = vpop.f32.mrf.mxu0
        %v1367 = vadd.f32 %v1142, %v1366
        %v1368 = vpop.f32.mrf.mxu0
        %1369 = vmatprep.mubr.f32.mxu0 %v511
        %1370 = vmatmul.mubr.f32.gmra.mxu0 %v479
        %v1371 = vpop.f32.mrf.mxu0
        %v1372 = vadd.f32 %v1147, %v1371
        %v1373 = vpop.f32.mrf.mxu0
        %1374 = vmatprep.mubr.f32.mxu0 %v512
        %1375 = vmatmul.mubr.f32.gmra.mxu0 %v480
        %v1376 = vpop.f32.mrf.mxu0
        %v1377 = vadd.f32 %v1152, %v1376
        %v1378 = vpop.f32.mrf.mxu0
        %1379 = vmatprep.mubr.f32.mxu0 %v513
        %1380 = vmatmul.mubr.f32.gmra.mxu0 %v481
        %v1381 = vpop.f32.mrf.mxu0
        %v1382 = vadd.f32 %v1157, %v1381
        %v1383 = vpop.f32.mrf.mxu0
        %1384 = vmatprep.mubr.f32.mxu0 %v514
        %1385 = vmatmul.mubr.f32.gmra.mxu0 %v482
        %v1386 = vpop.f32.mrf.mxu0
        %v1387 = vadd.f32 %v1162, %v1386
        %v1388 = vpop.f32.mrf.mxu0
        %1389 = vmatprep.mubr.f32.mxu0 %v515
        %1390 = vmatmul.mubr.f32.gmra.mxu0 %v483
        %v1391 = vpop.f32.mrf.mxu0
        %v1392 = vadd.f32 %v1167, %v1391
        %v1393 = vpop.f32.mrf.mxu0
        %1394 = vmatprep.mubr.f32.mxu0 %v516
        %1395 = vmatmul.mubr.f32.gmra.mxu0 %v484
        %v1396 = vpop.f32.mrf.mxu0
        %v1397 = vadd.f32 %v1172, %v1396
        %v1398 = vpop.f32.mrf.mxu0
        %1399 = vmatprep.mubr.f32.mxu0 %v517
        %1400 = vmatmul.mubr.f32.gmra.mxu0 %v485
        %v1401 = vpop.f32.mrf.mxu0
        %v1402 = vadd.f32 %v1177, %v1401
        %v1403 = vpop.f32.mrf.mxu0
        %1404 = vmatprep.mubr.f32.mxu0 %v518
        %1405 = vmatmul.mubr.f32.gmra.mxu0 %v486
        %v1406 = vpop.f32.mrf.mxu0
        %v1407 = vadd.f32 %v1182, %v1406
        %v1408 = vpop.f32.mrf.mxu0
        %1409 = vmatprep.mubr.f32.mxu0 %v519
        %1410 = vmatmul.mubr.f32.gmra.mxu0 %v487
        %v1411 = vpop.f32.mrf.mxu0
        %v1412 = vadd.f32 %v1187, %v1411
        %v1413 = vpop.f32.mrf.mxu0
        %1414 = vmatprep.mubr.f32.mxu0 %v520
        %1415 = vmatmul.mubr.f32.gmra.mxu0 %v488
        %v1416 = vpop.f32.mrf.mxu0
        %v1417 = vadd.f32 %v1192, %v1416
        %v1418 = vpop.f32.mrf.mxu0
        %1419 = vmatprep.mubr.f32.mxu0 %v521
        %1420 = vmatmul.mubr.f32.gmra.mxu0 %v489
        %v1421 = vpop.f32.mrf.mxu0
        %v1422 = vadd.f32 %v1197, %v1421
        %v1423 = vpop.f32.mrf.mxu0
        %1424 = vmatprep.mubr.f32.mxu0 %v522
        %1425 = vmatmul.mubr.f32.gmra.mxu0 %v490
        %v1426 = vpop.f32.mrf.mxu0
        %v1427 = vadd.f32 %v1202, %v1426
        %v1428 = vpop.f32.mrf.mxu0
        %1429 = vmatprep.mubr.f32.mxu0 %v523
        %1430 = vmatmul.mubr.f32.gmra.mxu0 %v491
        %v1431 = vpop.f32.mrf.mxu0
        %v1432 = vadd.f32 %v1207, %v1431
        %v1433 = vpop.f32.mrf.mxu0
        %1434 = vmatprep.mubr.f32.mxu0 %v524
        %1435 = vmatmul.mubr.f32.gmra.mxu0 %v492
        %v1436 = vpop.f32.mrf.mxu0
        %v1437 = vadd.f32 %v1212, %v1436
        %v1438 = vpop.f32.mrf.mxu0
        %1439 = vmatprep.mubr.f32.mxu0 %v525
        %1440 = vmatmul.mubr.f32.gmra.mxu0 %v493
        %v1441 = vpop.f32.mrf.mxu0
        %v1442 = vadd.f32 %v1217, %v1441
        %v1443 = vpop.f32.mrf.mxu0
        %1444 = vmatprep.mubr.f32.mxu0 %v526
        %1445 = vmatmul.mubr.f32.gmra.mxu0 %v494
        %v1446 = vpop.f32.mrf.mxu0
        %v1447 = vadd.f32 %v1222, %v1446
        %v1448 = vpop.f32.mrf.mxu0
        %1449 = vdwg.mxu0
        %1450 = vmatprep.subr.mxu0 0.0
        %1451 = vmatpush1.msra.mxu0 %v735
        %1452 = vmatprep.subr.mxu0 0.0
        %1453 = vmatpush1.msra.mxu0 %v734
        %1454 = vmatprep.subr.mxu0 0.0
        %1455 = vmatpush1.msra.mxu0 %v733
        %1456 = vmatprep.subr.mxu0 0.0
        %1457 = vmatpush1.msra.mxu0 %v732
        %1458 = vmatprep.subr.mxu0 0.0
        %1459 = vmatpush1.msra.mxu0 %v731
        %1460 = vmatprep.subr.mxu0 0.0
        %1461 = vmatpush1.msra.mxu0 %v730
        %1462 = vmatprep.subr.mxu0 0.0
        %1463 = vmatpush1.msra.mxu0 %v729
        %1464 = vmatprep.subr.mxu0 0.0
        %1465 = vmatpush1.msra.mxu0 %v728
        %1466 = vmatprep.subr.mxu0 0.0
        %1467 = vmatpush1.msra.mxu0 %v727
        %1468 = vmatprep.subr.mxu0 0.0
        %1469 = vmatpush1.msra.mxu0 %v726
        %1470 = vmatprep.subr.mxu0 0.0
        %1471 = vmatpush1.msra.mxu0 %v725
        %1472 = vmatprep.subr.mxu0 0.0
        %1473 = vmatpush1.msra.mxu0 %v724
        %1474 = vmatprep.subr.mxu0 0.0
        %1475 = vmatpush1.msra.mxu0 %v723
        %1476 = vmatprep.subr.mxu0 0.0
        %1477 = vmatpush1.msra.mxu0 %v722
        %1478 = vmatprep.subr.mxu0 0.0
        %1479 = vmatpush1.msra.mxu0 %v721
        %1480 = vmatprep.subr.mxu0 0.0
        %1481 = vmatpush1.msra.mxu0 %v720
        %1482 = vmatprep.subr.mxu0 0.0
        %1483 = vmatpush2.msra.mxu0 %v751
        %1484 = vmatprep.subr.mxu0 0.0
        %1485 = vmatpush2.msra.mxu0 %v750
        %1486 = vmatprep.subr.mxu0 0.0
        %1487 = vmatpush2.msra.mxu0 %v749
        %1488 = vmatprep.subr.mxu0 0.0
        %1489 = vmatpush2.msra.mxu0 %v748
        %1490 = vmatprep.subr.mxu0 0.0
        %1491 = vmatpush2.msra.mxu0 %v747
        %1492 = vmatprep.subr.mxu0 0.0
        %1493 = vmatpush2.msra.mxu0 %v746
        %1494 = vmatprep.subr.mxu0 0.0
        %1495 = vmatpush2.msra.mxu0 %v745
        %1496 = vmatprep.subr.mxu0 0.0
        %1497 = vmatpush2.msra.mxu0 %v744
        %1498 = vmatprep.subr.mxu0 0.0
        %1499 = vmatpush2.msra.mxu0 %v743
        %1500 = vmatprep.subr.mxu0 0.0
        %1501 = vmatpush2.msra.mxu0 %v742
        %1502 = vmatprep.subr.mxu0 0.0
        %1503 = vmatpush2.msra.mxu0 %v741
        %1504 = vmatprep.subr.mxu0 0.0
        %1505 = vmatpush2.msra.mxu0 %v740
        %1506 = vmatprep.subr.mxu0 0.0
        %1507 = vmatpush2.msra.mxu0 %v739
        %1508 = vmatprep.subr.mxu0 0.0
        %1509 = vmatpush2.msra.mxu0 %v738
        %1510 = vmatprep.subr.mxu0 0.0
        %1511 = vmatpush2.msra.mxu0 %v737
        %1512 = vmatprep.subr.mxu0 0.0
        %1513 = vmatpush2.msra.mxu0 %v736
        %1514 = vmatprep.mubr.f32.mxu0 %v560
        %1515 = vmatmul.mubr.f32.gmra.mxu0 %v528
        %v1516 = vpop.f32.mrf.mxu0
        %v1517 = vadd.f32 %v1292, %v1516
        %v1518 = vpop.f32.mrf.mxu0
        %1519 = vmatprep.mubr.f32.mxu0 %v561
        %1520 = vmatmul.mubr.f32.gmra.mxu0 %v529
        %v1521 = vpop.f32.mrf.mxu0
        %v1522 = vadd.f32 %v1297, %v1521
        %v1523 = vpop.f32.mrf.mxu0
        %1524 = vmatprep.mubr.f32.mxu0 %v562
        %1525 = vmatmul.mubr.f32.gmra.mxu0 %v530
        %v1526 = vpop.f32.mrf.mxu0
        %v1527 = vadd.f32 %v1302, %v1526
        %v1528 = vpop.f32.mrf.mxu0
        %1529 = vmatprep.mubr.f32.mxu0 %v563
        %1530 = vmatmul.mubr.f32.gmra.mxu0 %v531
        %v1531 = vpop.f32.mrf.mxu0
        %v1532 = vadd.f32 %v1307, %v1531
        %v1533 = vpop.f32.mrf.mxu0
        %1534 = vmatprep.mubr.f32.mxu0 %v564
        %1535 = vmatmul.mubr.f32.gmra.mxu0 %v532
        %v1536 = vpop.f32.mrf.mxu0
        %v1537 = vadd.f32 %v1312, %v1536
        %v1538 = vpop.f32.mrf.mxu0
        %1539 = vmatprep.mubr.f32.mxu0 %v565
        %1540 = vmatmul.mubr.f32.gmra.mxu0 %v533
        %v1541 = vpop.f32.mrf.mxu0
        %v1542 = vadd.f32 %v1317, %v1541
        %v1543 = vpop.f32.mrf.mxu0
        %1544 = vmatprep.mubr.f32.mxu0 %v566
        %1545 = vmatmul.mubr.f32.gmra.mxu0 %v534
        %v1546 = vpop.f32.mrf.mxu0
        %v1547 = vadd.f32 %v1322, %v1546
        %v1548 = vpop.f32.mrf.mxu0
        %1549 = vmatprep.mubr.f32.mxu0 %v567
        %1550 = vmatmul.mubr.f32.gmra.mxu0 %v535
        %v1551 = vpop.f32.mrf.mxu0
        %v1552 = vadd.f32 %v1327, %v1551
        %v1553 = vpop.f32.mrf.mxu0
        %1554 = vmatprep.mubr.f32.mxu0 %v568
        %1555 = vmatmul.mubr.f32.gmra.mxu0 %v536
        %v1556 = vpop.f32.mrf.mxu0
        %v1557 = vadd.f32 %v1332, %v1556
        %v1558 = vpop.f32.mrf.mxu0
        %1559 = vmatprep.mubr.f32.mxu0 %v569
        %1560 = vmatmul.mubr.f32.gmra.mxu0 %v537
        %v1561 = vpop.f32.mrf.mxu0
        %v1562 = vadd.f32 %v1337, %v1561
        %v1563 = vpop.f32.mrf.mxu0
        %1564 = vmatprep.mubr.f32.mxu0 %v570
        %1565 = vmatmul.mubr.f32.gmra.mxu0 %v538
        %v1566 = vpop.f32.mrf.mxu0
        %v1567 = vadd.f32 %v1342, %v1566
        %v1568 = vpop.f32.mrf.mxu0
        %1569 = vmatprep.mubr.f32.mxu0 %v571
        %1570 = vmatmul.mubr.f32.gmra.mxu0 %v539
        %v1571 = vpop.f32.mrf.mxu0
        %v1572 = vadd.f32 %v1347, %v1571
        %v1573 = vpop.f32.mrf.mxu0
        %1574 = vmatprep.mubr.f32.mxu0 %v572
        %1575 = vmatmul.mubr.f32.gmra.mxu0 %v540
        %v1576 = vpop.f32.mrf.mxu0
        %v1577 = vadd.f32 %v1352, %v1576
        %v1578 = vpop.f32.mrf.mxu0
        %1579 = vmatprep.mubr.f32.mxu0 %v573
        %1580 = vmatmul.mubr.f32.gmra.mxu0 %v541
        %v1581 = vpop.f32.mrf.mxu0
        %v1582 = vadd.f32 %v1357, %v1581
        %v1583 = vpop.f32.mrf.mxu0
        %1584 = vmatprep.mubr.f32.mxu0 %v574
        %1585 = vmatmul.mubr.f32.gmra.mxu0 %v542
        %v1586 = vpop.f32.mrf.mxu0
        %v1587 = vadd.f32 %v1362, %v1586
        %v1588 = vpop.f32.mrf.mxu0
        %1589 = vmatprep.mubr.f32.mxu0 %v575
        %1590 = vmatmul.mubr.f32.gmra.mxu0 %v543
        %v1591 = vpop.f32.mrf.mxu0
        %v1592 = vadd.f32 %v1367, %v1591
        %v1593 = vpop.f32.mrf.mxu0
        %1594 = vmatprep.mubr.f32.mxu0 %v576
        %1595 = vmatmul.mubr.f32.gmra.mxu0 %v544
        %v1596 = vpop.f32.mrf.mxu0
        %v1597 = vadd.f32 %v1372, %v1596
        %v1598 = vpop.f32.mrf.mxu0
        %1599 = vmatprep.mubr.f32.mxu0 %v577
        %1600 = vmatmul.mubr.f32.gmra.mxu0 %v545
        %v1601 = vpop.f32.mrf.mxu0
        %v1602 = vadd.f32 %v1377, %v1601
        %v1603 = vpop.f32.mrf.mxu0
        %1604 = vmatprep.mubr.f32.mxu0 %v578
        %1605 = vmatmul.mubr.f32.gmra.mxu0 %v546
        %v1606 = vpop.f32.mrf.mxu0
        %v1607 = vadd.f32 %v1382, %v1606
        %v1608 = vpop.f32.mrf.mxu0
        %1609 = vmatprep.mubr.f32.mxu0 %v579
        %1610 = vmatmul.mubr.f32.gmra.mxu0 %v547
        %v1611 = vpop.f32.mrf.mxu0
        %v1612 = vadd.f32 %v1387, %v1611
        %v1613 = vpop.f32.mrf.mxu0
        %1614 = vmatprep.mubr.f32.mxu0 %v580
        %1615 = vmatmul.mubr.f32.gmra.mxu0 %v548
        %v1616 = vpop.f32.mrf.mxu0
        %v1617 = vadd.f32 %v1392, %v1616
        %v1618 = vpop.f32.mrf.mxu0
        %1619 = vmatprep.mubr.f32.mxu0 %v581
        %1620 = vmatmul.mubr.f32.gmra.mxu0 %v549
        %v1621 = vpop.f32.mrf.mxu0
        %v1622 = vadd.f32 %v1397, %v1621
        %v1623 = vpop.f32.mrf.mxu0
        %1624 = vmatprep.mubr.f32.mxu0 %v582
        %1625 = vmatmul.mubr.f32.gmra.mxu0 %v550
        %v1626 = vpop.f32.mrf.mxu0
        %v1627 = vadd.f32 %v1402, %v1626
        %v1628 = vpop.f32.mrf.mxu0
        %1629 = vmatprep.mubr.f32.mxu0 %v583
        %1630 = vmatmul.mubr.f32.gmra.mxu0 %v551
        %v1631 = vpop.f32.mrf.mxu0
        %v1632 = vadd.f32 %v1407, %v1631
        %v1633 = vpop.f32.mrf.mxu0
        %1634 = vmatprep.mubr.f32.mxu0 %v584
        %1635 = vmatmul.mubr.f32.gmra.mxu0 %v552
        %v1636 = vpop.f32.mrf.mxu0
        %v1637 = vadd.f32 %v1412, %v1636
        %v1638 = vpop.f32.mrf.mxu0
        %1639 = vmatprep.mubr.f32.mxu0 %v585
        %1640 = vmatmul.mubr.f32.gmra.mxu0 %v553
        %v1641 = vpop.f32.mrf.mxu0
        %v1642 = vadd.f32 %v1417, %v1641
        %v1643 = vpop.f32.mrf.mxu0
        %1644 = vmatprep.mubr.f32.mxu0 %v586
        %1645 = vmatmul.mubr.f32.gmra.mxu0 %v554
        %v1646 = vpop.f32.mrf.mxu0
        %v1647 = vadd.f32 %v1422, %v1646
        %v1648 = vpop.f32.mrf.mxu0
        %1649 = vmatprep.mubr.f32.mxu0 %v587
        %1650 = vmatmul.mubr.f32.gmra.mxu0 %v555
        %v1651 = vpop.f32.mrf.mxu0
        %v1652 = vadd.f32 %v1427, %v1651
        %v1653 = vpop.f32.mrf.mxu0
        %1654 = vmatprep.mubr.f32.mxu0 %v588
        %1655 = vmatmul.mubr.f32.gmra.mxu0 %v556
        %v1656 = vpop.f32.mrf.mxu0
        %v1657 = vadd.f32 %v1432, %v1656
        %v1658 = vpop.f32.mrf.mxu0
        %1659 = vmatprep.mubr.f32.mxu0 %v589
        %1660 = vmatmul.mubr.f32.gmra.mxu0 %v557
        %v1661 = vpop.f32.mrf.mxu0
        %v1662 = vadd.f32 %v1437, %v1661
        %v1663 = vpop.f32.mrf.mxu0
        %1664 = vmatprep.mubr.f32.mxu0 %v590
        %1665 = vmatmul.mubr.f32.gmra.mxu0 %v558
        %v1666 = vpop.f32.mrf.mxu0
        %v1667 = vadd.f32 %v1442, %v1666
        %v1668 = vpop.f32.mrf.mxu0
        %1669 = vmatprep.mubr.f32.mxu0 %v591
        %1670 = vmatmul.mubr.f32.gmra.mxu0 %v559
        %v1671 = vpop.f32.mrf.mxu0
        %v1672 = vadd.f32 %v1447, %v1671
        %v1673 = vpop.f32.mrf.mxu0
        %1674 = vdwg.mxu0
        %1675 = vmatprep.subr.mxu0 0.0
        %1676 = vmatpush1.msra.mxu0 %v767
        %1677 = vmatprep.subr.mxu0 0.0
        %1678 = vmatpush1.msra.mxu0 %v766
        %1679 = vmatprep.subr.mxu0 0.0
        %1680 = vmatpush1.msra.mxu0 %v765
        %1681 = vmatprep.subr.mxu0 0.0
        %1682 = vmatpush1.msra.mxu0 %v764
        %1683 = vmatprep.subr.mxu0 0.0
        %1684 = vmatpush1.msra.mxu0 %v763
        %1685 = vmatprep.subr.mxu0 0.0
        %1686 = vmatpush1.msra.mxu0 %v762
        %1687 = vmatprep.subr.mxu0 0.0
        %1688 = vmatpush1.msra.mxu0 %v761
        %1689 = vmatprep.subr.mxu0 0.0
        %1690 = vmatpush1.msra.mxu0 %v760
        %1691 = vmatprep.subr.mxu0 0.0
        %1692 = vmatpush1.msra.mxu0 %v759
        %1693 = vmatprep.subr.mxu0 0.0
        %1694 = vmatpush1.msra.mxu0 %v758
        %1695 = vmatprep.subr.mxu0 0.0
        %1696 = vmatpush1.msra.mxu0 %v757
        %1697 = vmatprep.subr.mxu0 0.0
        %1698 = vmatpush1.msra.mxu0 %v756
        %1699 = vmatprep.subr.mxu0 0.0
        %1700 = vmatpush1.msra.mxu0 %v755
        %1701 = vmatprep.subr.mxu0 0.0
        %1702 = vmatpush1.msra.mxu0 %v754
        %1703 = vmatprep.subr.mxu0 0.0
        %1704 = vmatpush1.msra.mxu0 %v753
        %1705 = vmatprep.subr.mxu0 0.0
        %1706 = vmatpush1.msra.mxu0 %v752
        %1707 = vmatprep.subr.mxu0 0.0
        %1708 = vmatpush2.msra.mxu0 0.0
        %1709 = vmatprep.subr.mxu0 0.0
        %1710 = vmatpush2.msra.mxu0 0.0
        %1711 = vmatprep.subr.mxu0 0.0
        %1712 = vmatpush2.msra.mxu0 0.0
        %1713 = vmatprep.subr.mxu0 0.0
        %1714 = vmatpush2.msra.mxu0 0.0
        %1715 = vmatprep.subr.mxu0 0.0
        %1716 = vmatpush2.msra.mxu0 0.0
        %1717 = vmatprep.subr.mxu0 0.0
        %1718 = vmatpush2.msra.mxu0 0.0
        %1719 = vmatprep.subr.mxu0 0.0
        %1720 = vmatpush2.msra.mxu0 0.0
        %1721 = vmatprep.subr.mxu0 0.0
        %1722 = vmatpush2.msra.mxu0 0.0
        %1723 = vmatprep.subr.mxu0 0.0
        %1724 = vmatpush2.msra.mxu0 0.0
        %1725 = vmatprep.subr.mxu0 0.0
        %1726 = vmatpush2.msra.mxu0 0.0
        %1727 = vmatprep.subr.mxu0 0.0
        %1728 = vmatpush2.msra.mxu0 0.0
        %1729 = vmatprep.subr.mxu0 0.0
        %1730 = vmatpush2.msra.mxu0 0.0
        %1731 = vmatprep.subr.mxu0 0.0
        %1732 = vmatpush2.msra.mxu0 0.0
        %1733 = vmatprep.subr.mxu0 0.0
        %1734 = vmatpush2.msra.mxu0 0.0
        %1735 = vmatprep.subr.mxu0 0.0
        %1736 = vmatpush2.msra.mxu0 0.0
        %1737 = vmatprep.subr.mxu0 0.0
        %1738 = vmatpush2.msra.mxu0 0.0
        %1739 = vmatprep.mubr.f32.mxu0 0.0
        %1740 = vmatmul.mubr.f32.gmra.mxu0 %v592
        %v1741 = vpop.f32.mrf.mxu0
        %v1742 = vadd.f32 %v1517, %v1741
        %v1743 = vpop.f32.mrf.mxu0
        %1744 = vmatprep.mubr.f32.mxu0 0.0
        %1745 = vmatmul.mubr.f32.gmra.mxu0 %v593
        %v1746 = vpop.f32.mrf.mxu0
        %v1747 = vadd.f32 %v1522, %v1746
        %v1748 = vpop.f32.mrf.mxu0
        %1749 = vmatprep.mubr.f32.mxu0 0.0
        %1750 = vmatmul.mubr.f32.gmra.mxu0 %v594
        %v1751 = vpop.f32.mrf.mxu0
        %v1752 = vadd.f32 %v1527, %v1751
        %v1753 = vpop.f32.mrf.mxu0
        %1754 = vmatprep.mubr.f32.mxu0 0.0
        %1755 = vmatmul.mubr.f32.gmra.mxu0 %v595
        %v1756 = vpop.f32.mrf.mxu0
        %v1757 = vadd.f32 %v1532, %v1756
        %v1758 = vpop.f32.mrf.mxu0
        %1759 = vmatprep.mubr.f32.mxu0 0.0
        %1760 = vmatmul.mubr.f32.gmra.mxu0 %v596
        %v1761 = vpop.f32.mrf.mxu0
        %v1762 = vadd.f32 %v1537, %v1761
        %v1763 = vpop.f32.mrf.mxu0
        %1764 = vmatprep.mubr.f32.mxu0 0.0
        %1765 = vmatmul.mubr.f32.gmra.mxu0 %v597
        %v1766 = vpop.f32.mrf.mxu0
        %v1767 = vadd.f32 %v1542, %v1766
        %v1768 = vpop.f32.mrf.mxu0
        %1769 = vmatprep.mubr.f32.mxu0 0.0
        %1770 = vmatmul.mubr.f32.gmra.mxu0 %v598
        %v1771 = vpop.f32.mrf.mxu0
        %v1772 = vadd.f32 %v1547, %v1771
        %v1773 = vpop.f32.mrf.mxu0
        %1774 = vmatprep.mubr.f32.mxu0 0.0
        %1775 = vmatmul.mubr.f32.gmra.mxu0 %v599
        %v1776 = vpop.f32.mrf.mxu0
        %v1777 = vadd.f32 %v1552, %v1776
        %v1778 = vpop.f32.mrf.mxu0
        %1779 = vmatprep.mubr.f32.mxu0 0.0
        %1780 = vmatmul.mubr.f32.gmra.mxu0 %v600
        %v1781 = vpop.f32.mrf.mxu0
        %v1782 = vadd.f32 %v1557, %v1781
        %v1783 = vpop.f32.mrf.mxu0
        %1784 = vmatprep.mubr.f32.mxu0 0.0
        %1785 = vmatmul.mubr.f32.gmra.mxu0 %v601
        %v1786 = vpop.f32.mrf.mxu0
        %v1787 = vadd.f32 %v1562, %v1786
        %v1788 = vpop.f32.mrf.mxu0
        %1789 = vmatprep.mubr.f32.mxu0 0.0
        %1790 = vmatmul.mubr.f32.gmra.mxu0 %v602
        %v1791 = vpop.f32.mrf.mxu0
        %v1792 = vadd.f32 %v1567, %v1791
        %v1793 = vpop.f32.mrf.mxu0
        %1794 = vmatprep.mubr.f32.mxu0 0.0
        %1795 = vmatmul.mubr.f32.gmra.mxu0 %v603
        %v1796 = vpop.f32.mrf.mxu0
        %v1797 = vadd.f32 %v1572, %v1796
        %v1798 = vpop.f32.mrf.mxu0
        %1799 = vmatprep.mubr.f32.mxu0 0.0
        %1800 = vmatmul.mubr.f32.gmra.mxu0 %v604
        %v1801 = vpop.f32.mrf.mxu0
        %v1802 = vadd.f32 %v1577, %v1801
        %v1803 = vpop.f32.mrf.mxu0
        %1804 = vmatprep.mubr.f32.mxu0 0.0
        %1805 = vmatmul.mubr.f32.gmra.mxu0 %v605
        %v1806 = vpop.f32.mrf.mxu0
        %v1807 = vadd.f32 %v1582, %v1806
        %v1808 = vpop.f32.mrf.mxu0
        %1809 = vmatprep.mubr.f32.mxu0 0.0
        %1810 = vmatmul.mubr.f32.gmra.mxu0 %v606
        %v1811 = vpop.f32.mrf.mxu0
        %v1812 = vadd.f32 %v1587, %v1811
        %v1813 = vpop.f32.mrf.mxu0
        %1814 = vmatprep.mubr.f32.mxu0 0.0
        %1815 = vmatmul.mubr.f32.gmra.mxu0 %v607
        %v1816 = vpop.f32.mrf.mxu0
        %v1817 = vadd.f32 %v1592, %v1816
        %v1818 = vpop.f32.mrf.mxu0
        %1819 = vmatprep.mubr.f32.mxu0 0.0
        %1820 = vmatmul.mubr.f32.gmra.mxu0 %v608
        %v1821 = vpop.f32.mrf.mxu0
        %v1822 = vadd.f32 %v1597, %v1821
        %v1823 = vpop.f32.mrf.mxu0
        %1824 = vmatprep.mubr.f32.mxu0 0.0
        %1825 = vmatmul.mubr.f32.gmra.mxu0 %v609
        %v1826 = vpop.f32.mrf.mxu0
        %v1827 = vadd.f32 %v1602, %v1826
        %v1828 = vpop.f32.mrf.mxu0
        %1829 = vmatprep.mubr.f32.mxu0 0.0
        %1830 = vmatmul.mubr.f32.gmra.mxu0 %v610
        %v1831 = vpop.f32.mrf.mxu0
        %v1832 = vadd.f32 %v1607, %v1831
        %v1833 = vpop.f32.mrf.mxu0
        %1834 = vmatprep.mubr.f32.mxu0 0.0
        %1835 = vmatmul.mubr.f32.gmra.mxu0 %v611
        %v1836 = vpop.f32.mrf.mxu0
        %v1837 = vadd.f32 %v1612, %v1836
        %v1838 = vpop.f32.mrf.mxu0
        %1839 = vmatprep.mubr.f32.mxu0 0.0
        %1840 = vmatmul.mubr.f32.gmra.mxu0 %v612
        %v1841 = vpop.f32.mrf.mxu0
        %v1842 = vadd.f32 %v1617, %v1841
        %v1843 = vpop.f32.mrf.mxu0
        %1844 = vmatprep.mubr.f32.mxu0 0.0
        %1845 = vmatmul.mubr.f32.gmra.mxu0 %v613
        %v1846 = vpop.f32.mrf.mxu0
        %v1847 = vadd.f32 %v1622, %v1846
        %v1848 = vpop.f32.mrf.mxu0
        %1849 = vmatprep.mubr.f32.mxu0 0.0
        %1850 = vmatmul.mubr.f32.gmra.mxu0 %v614
        %v1851 = vpop.f32.mrf.mxu0
        %v1852 = vadd.f32 %v1627, %v1851
        %v1853 = vpop.f32.mrf.mxu0
        %1854 = vmatprep.mubr.f32.mxu0 0.0
        %1855 = vmatmul.mubr.f32.gmra.mxu0 %v615
        %v1856 = vpop.f32.mrf.mxu0
        %v1857 = vadd.f32 %v1632, %v1856
        %v1858 = vpop.f32.mrf.mxu0
        %1859 = vmatprep.mubr.f32.mxu0 0.0
        %1860 = vmatmul.mubr.f32.gmra.mxu0 %v616
        %v1861 = vpop.f32.mrf.mxu0
        %v1862 = vadd.f32 %v1637, %v1861
        %v1863 = vpop.f32.mrf.mxu0
        %1864 = vmatprep.mubr.f32.mxu0 0.0
        %1865 = vmatmul.mubr.f32.gmra.mxu0 %v617
        %v1866 = vpop.f32.mrf.mxu0
        %v1867 = vadd.f32 %v1642, %v1866
        %v1868 = vpop.f32.mrf.mxu0
        %1869 = vmatprep.mubr.f32.mxu0 0.0
        %1870 = vmatmul.mubr.f32.gmra.mxu0 %v618
        %v1871 = vpop.f32.mrf.mxu0
        %v1872 = vadd.f32 %v1647, %v1871
        %v1873 = vpop.f32.mrf.mxu0
        %1874 = vmatprep.mubr.f32.mxu0 0.0
        %1875 = vmatmul.mubr.f32.gmra.mxu0 %v619
        %v1876 = vpop.f32.mrf.mxu0
        %v1877 = vadd.f32 %v1652, %v1876
        %v1878 = vpop.f32.mrf.mxu0
        %1879 = vmatprep.mubr.f32.mxu0 0.0
        %1880 = vmatmul.mubr.f32.gmra.mxu0 %v620
        %v1881 = vpop.f32.mrf.mxu0
        %v1882 = vadd.f32 %v1657, %v1881
        %v1883 = vpop.f32.mrf.mxu0
        %1884 = vmatprep.mubr.f32.mxu0 0.0
        %1885 = vmatmul.mubr.f32.gmra.mxu0 %v621
        %v1886 = vpop.f32.mrf.mxu0
        %v1887 = vadd.f32 %v1662, %v1886
        %v1888 = vpop.f32.mrf.mxu0
        %1889 = vmatprep.mubr.f32.mxu0 0.0
        %1890 = vmatmul.mubr.f32.gmra.mxu0 %v622
        %v1891 = vpop.f32.mrf.mxu0
        %v1892 = vadd.f32 %v1667, %v1891
        %v1893 = vpop.f32.mrf.mxu0
        %1894 = vmatprep.mubr.f32.mxu0 0.0
        %1895 = vmatmul.mubr.f32.gmra.mxu0 %v623
        %v1896 = vpop.f32.mrf.mxu0
        %v1897 = vadd.f32 %v1672, %v1896
        %v1898 = vpop.f32.mrf.mxu0
        %1899 = vdwg.mxu0
        %v1900 = vld [vmem:[%s3] sm:$0x1]
        %vm1901 = vcmp.gt.f32.partialorder %v1742, 0.0
        %vm1902 = vcmp.gt.f32.partialorder %v1747, 0.0
        %vm1903 = vcmp.gt.f32.partialorder %v1752, 0.0
        %vm1904 = vcmp.gt.f32.partialorder %v1757, 0.0
        %vm1905 = vcmp.gt.f32.partialorder %v1762, 0.0
        %vm1906 = vcmp.gt.f32.partialorder %v1767, 0.0
        %vm1907 = vcmp.gt.f32.partialorder %v1772, 0.0
        %vm1908 = vcmp.gt.f32.partialorder %v1777, 0.0
        %vm1909 = vcmp.gt.f32.partialorder %v1782, 0.0
        %vm1910 = vcmp.gt.f32.partialorder %v1787, 0.0
        %vm1911 = vcmp.gt.f32.partialorder %v1792, 0.0
        %vm1912 = vcmp.gt.f32.partialorder %v1797, 0.0
        %vm1913 = vcmp.gt.f32.partialorder %v1802, 0.0
        %vm1914 = vcmp.gt.f32.partialorder %v1807, 0.0
        %vm1915 = vcmp.gt.f32.partialorder %v1812, 0.0
        %vm1916 = vcmp.gt.f32.partialorder %v1817, 0.0
        %vm1917 = vcmp.gt.f32.partialorder %v1822, 0.0
        %vm1918 = vcmp.gt.f32.partialorder %v1827, 0.0
        %vm1919 = vcmp.gt.f32.partialorder %v1832, 0.0
        %vm1920 = vcmp.gt.f32.partialorder %v1837, 0.0
        %vm1921 = vcmp.gt.f32.partialorder %v1842, 0.0
        %vm1922 = vcmp.gt.f32.partialorder %v1847, 0.0
        %vm1923 = vcmp.gt.f32.partialorder %v1852, 0.0
        %vm1924 = vcmp.gt.f32.partialorder %v1857, 0.0
        %vm1925 = vcmp.gt.f32.partialorder %v1862, 0.0
        %vm1926 = vcmp.gt.f32.partialorder %v1867, 0.0
        %vm1927 = vcmp.gt.f32.partialorder %v1872, 0.0
        %vm1928 = vcmp.gt.f32.partialorder %v1877, 0.0
        %vm1929 = vcmp.gt.f32.partialorder %v1882, 0.0
        %vm1930 = vcmp.gt.f32.partialorder %v1887, 0.0
        %vm1931 = vcmp.gt.f32.partialorder %v1892, 0.0
        %vm1932 = vcmp.gt.f32.partialorder %v1897, 0.0
        %v1934 = vlaneseq
        %v1935 = vshrl.u32 %v1934, 7
        %v1936 = vsub.s32 0, %v1935
        %v1937 = vrot.slane %v1900, %v1936
        %v1939 = vmul.f32 %v1742, %v1937
        %v1940 = vmul.f32 %v1747, %v1937
        %v1941 = vmul.f32 %v1752, %v1937
        %v1942 = vmul.f32 %v1757, %v1937
        %v1943 = vmul.f32 %v1762, %v1937
        %v1944 = vmul.f32 %v1767, %v1937
        %v1945 = vmul.f32 %v1772, %v1937
        %v1946 = vmul.f32 %v1777, %v1937
        %v1947 = vmul.f32 %v1782, %v1937
        %v1948 = vmul.f32 %v1787, %v1937
        %v1949 = vmul.f32 %v1792, %v1937
        %v1950 = vmul.f32 %v1797, %v1937
        %v1951 = vmul.f32 %v1802, %v1937
        %v1952 = vmul.f32 %v1807, %v1937
        %v1953 = vmul.f32 %v1812, %v1937
        %v1954 = vmul.f32 %v1817, %v1937
        %v1955 = vmul.f32 %v1822, %v1937
        %v1956 = vmul.f32 %v1827, %v1937
        %v1957 = vmul.f32 %v1832, %v1937
        %v1958 = vmul.f32 %v1837, %v1937
        %v1959 = vmul.f32 %v1842, %v1937
        %v1960 = vmul.f32 %v1847, %v1937
        %v1961 = vmul.f32 %v1852, %v1937
        %v1962 = vmul.f32 %v1857, %v1937
        %v1963 = vmul.f32 %v1862, %v1937
        %v1964 = vmul.f32 %v1867, %v1937
        %v1965 = vmul.f32 %v1872, %v1937
        %v1966 = vmul.f32 %v1877, %v1937
        %v1967 = vmul.f32 %v1882, %v1937
        %v1968 = vmul.f32 %v1887, %v1937
        %v1969 = vmul.f32 %v1892, %v1937
        %v1970 = vmul.f32 %v1897, %v1937
        %v1971 = vsel %vm1901, %v1742, %v1939
        %v1972 = vsel %vm1902, %v1747, %v1940
        %v1973 = vsel %vm1903, %v1752, %v1941
        %v1974 = vsel %vm1904, %v1757, %v1942
        %v1975 = vsel %vm1905, %v1762, %v1943
        %v1976 = vsel %vm1906, %v1767, %v1944
        %v1977 = vsel %vm1907, %v1772, %v1945
        %v1978 = vsel %vm1908, %v1777, %v1946
        %v1979 = vsel %vm1909, %v1782, %v1947
        %v1980 = vsel %vm1910, %v1787, %v1948
        %v1981 = vsel %vm1911, %v1792, %v1949
        %v1982 = vsel %vm1912, %v1797, %v1950
        %v1983 = vsel %vm1913, %v1802, %v1951
        %v1984 = vsel %vm1914, %v1807, %v1952
        %v1985 = vsel %vm1915, %v1812, %v1953
        %v1986 = vsel %vm1916, %v1817, %v1954
        %v1987 = vsel %vm1917, %v1822, %v1955
        %v1988 = vsel %vm1918, %v1827, %v1956
        %v1989 = vsel %vm1919, %v1832, %v1957
        %v1990 = vsel %vm1920, %v1837, %v1958
        %v1991 = vsel %vm1921, %v1842, %v1959
        %v1992 = vsel %vm1922, %v1847, %v1960
        %v1993 = vsel %vm1923, %v1852, %v1961
        %v1994 = vsel %vm1924, %v1857, %v1962
        %v1995 = vsel %vm1925, %v1862, %v1963
        %v1996 = vsel %vm1926, %v1867, %v1964
        %v1997 = vsel %vm1927, %v1872, %v1965
        %v1998 = vsel %vm1928, %v1877, %v1966
        %v1999 = vsel %vm1929, %v1882, %v1967
        %v2000 = vsel %vm1930, %v1887, %v1968
        %v2001 = vsel %vm1931, %v1892, %v1969
        %v2002 = vsel %vm1932, %v1897, %v1970
        %2003 = vst [vmem:[%s230] sm:$0xff] %v1971
        %2004 = vst [vmem:[%s230 + $0x8] sm:$0xff] %v1972
        %2005 = vst [vmem:[%s230 + $0x10] sm:$0xff] %v1973
        %2006 = vst [vmem:[%s230 + $0x18] sm:$0xff] %v1974
        %2007 = vst [vmem:[%s230 + $0x20] sm:$0xff] %v1975
        %2008 = vst [vmem:[%s230 + $0x28] sm:$0xff] %v1976
        %2009 = vst [vmem:[%s230 + $0x30] sm:$0xff] %v1977
        %2010 = vst [vmem:[%s230 + $0x38] sm:$0xff] %v1978
        %2011 = vst [vmem:[%s230 + $0x40] sm:$0xff] %v1979
        %2012 = vst [vmem:[%s230 + $0x48] sm:$0xff] %v1980
        %2013 = vst [vmem:[%s230 + $0x50] sm:$0xff] %v1981
        %2014 = vst [vmem:[%s230 + $0x58] sm:$0xff] %v1982
        %2015 = vst [vmem:[%s230 + $0x60] sm:$0xff] %v1983
        %2016 = vst [vmem:[%s230 + $0x68] sm:$0xff] %v1984
        %2017 = vst [vmem:[%s230 + $0x70] sm:$0xff] %v1985
        %2018 = vst [vmem:[%s230 + $0x78] sm:$0xff] %v1986
        %2019 = vst [vmem:[%s230 + $0x80] sm:$0xff] %v1987
        %2020 = vst [vmem:[%s230 + $0x88] sm:$0xff] %v1988
        %2021 = vst [vmem:[%s230 + $0x90] sm:$0xff] %v1989
        %2022 = vst [vmem:[%s230 + $0x98] sm:$0xff] %v1990
        %2023 = vst [vmem:[%s230 + $0xa0] sm:$0xff] %v1991
        %2024 = vst [vmem:[%s230 + $0xa8] sm:$0xff] %v1992
        %2025 = vst [vmem:[%s230 + $0xb0] sm:$0xff] %v1993
        %2026 = vst [vmem:[%s230 + $0xb8] sm:$0xff] %v1994
        %2027 = vst [vmem:[%s230 + $0xc0] sm:$0xff] %v1995
        %2028 = vst [vmem:[%s230 + $0xc8] sm:$0xff] %v1996
        %2029 = vst [vmem:[%s230 + $0xd0] sm:$0xff] %v1997
        %2030 = vst [vmem:[%s230 + $0xd8] sm:$0xff] %v1998
        %2031 = vst [vmem:[%s230 + $0xe0] sm:$0xff] %v1999
        %2032 = vst [vmem:[%s230 + $0xe8] sm:$0xff] %v2000
        %2033 = vst [vmem:[%s230 + $0xf0] sm:$0xff] %v2001
        %2034 = vst [vmem:[%s230 + $0xf8] sm:$0xff] %v2002
        %s2035 = sand.u32 %s119, 1
        %s2036 = scalar_lea.sflag [#allocation5], %s2035
        %s2037 = sand.u32 %s119, 1
        %s2038 = smul.addr %s2037, 256
        %s2039 = scalar_lea.vmem [#allocation8], %s2038
        // Predicated region
        $region45: #{tpu_custom_call.1} parent=35 // pred_check
          %p2040 = pneg %p129
        $region46: #{tpu_custom_call.1} parent=35 // pred_check_branch
          %2042 = sbr.rel (%p2040) target = $region48
        $region47: #{tpu_custom_call.1} parent=35 // pred_region
          %s2044 = ssub.s32 4096, 4096
          %2045 = vsyncadd %s2036, %s2044
          %s2046 = smul.addr %s22, 32
          %s2047 = smul.addr %s2046, 128
          %s2048 = scalar_lea.hbm %s4, %s2047
          %s2049 = sshll.u32 %s2039, 4
          %s2050 = int_to_ptr.vmem [resolvable:$true] %s2049
          %2055 = dma.vmem_to_hbm [thread:$0]  %s2050, 4096, %s2048, %s2036, 128, 128, 8
        $region48: #{tpu_custom_call.1} parent=35 // pred_fallthru
          _
      $region36: #{tpu_custom_call.1} parent=5 // pred_fallthru
        _
      %p2056 = scmp.le.s32.totalorder 2, %s17
      // Predicated region
      $region49: #{tpu_custom_call.1} parent=5 // pred_check
        %p2057 = pneg %p2056
      $region50: #{tpu_custom_call.1} parent=5 // pred_check_branch
        %2059 = sbr.rel (%p2057) target = $region52
      $region51: #{tpu_custom_call.1} parent=5 // pred_region
        %s2060 = ssub.s32 %s17, 2
        // Predicated region
        $region53: #{tpu_custom_call.1} parent=51 // pred_check
          %p2061 = pneg %p135
        $region54: #{tpu_custom_call.1} parent=51 // pred_check_branch
          %2063 = sbr.rel (%p2061) target = $region56
        $region55: #{tpu_custom_call.1} parent=51 // pred_region
          %s2064 = sand.u32 %s120, 1
          %s2065 = scalar_lea.sflag [#allocation5], %s2064
          %s2066 = sand.u32 %s120, 1
          %s2067 = smul.addr %s2066, 256
          %s2068 = scalar_lea.vmem [#allocation8], %s2067
          %2069 = dma.done %s2065, 4096
        $region56: #{tpu_custom_call.1} parent=51 // pred_fallthru
          _
      $region52: #{tpu_custom_call.1} parent=5 // pred_fallthru
        _
    $region6: #{tpu_custom_call.1} parent=1 // loop_footer
      %s21 = sadd.s32 1, %s17
    $region7: #{tpu_custom_call.1} parent=1 // loop_footer_branch
      %16 = sbr.rel target = $region3
    $region8: #{tpu_custom_call.1} parent=1 // loop_exit
      _
    %2070 = vsyncpa [#allocation4], 1
    %s2071 = scalar_lea.sflag [#allocation4], 1
    %2072 = vsyncpa %s2071, 1
    %2073 = vsyncpa [#allocation7], 1
    %2074 = vsyncpa [#allocation5], 1
    %s2075 = scalar_lea.sflag [#allocation5], 1
    %2076 = vsyncpa %s2075, 1

</llo_original>
